<compile_context>
chip_gen: v5e
topology: v5e:2x2
jax: 0.10.0
libtpu: 0.0.40
codegen_flags: <defaults>
</compile_context>

<pallas_src>
import functools
import math

import jax
import jax.numpy as jnp
import numpy as np
from jax.experimental import pallas as pl
from jax.experimental.pallas import tpu as pltpu

# ---------------- small synthetic config ----------------
BATCH = 2
SEQ = 8
IN_CHANNELS = 16
MODEL_CHANNELS = 16
OUT_CHANNELS = 16
HIDDEN = 32                       # config.hidden_size
TIME_EMBED_DIM = MODEL_CHANNELS * 4
NUM_HEADS = 2                     # config.num_attention_heads
HEAD_DIM = HIDDEN // NUM_HEADS
INTERMEDIATE = 64                 # config.intermediate_size
NUM_LAYERS = 2                    # config.num_hidden_layers (small synthetic)
NUM_WEEK = 8
NUM_HOUR = 25
MAX_POS = 512                     # config.max_position_embeddings
LN_EPS = 1e-12                    # config.layer_norm_eps
PACK_WIDTH = max(TIME_EMBED_DIM, INTERMEDIATE, HIDDEN)   # lane width of the param slab


# ---------------- parameter packing (host side) ----------------
class _ParamPacker:
    """Packs every parameter (and the precomputed sequence embedding) into ONE
    [rows, PACK_WIDTH] f32 slab.  Row offsets are 8-aligned so every in-kernel
    static slice is sublane-aligned; narrow tensors are zero-padded in lanes and
    re-sliced at lane offset 0 (cheap) inside the kernel."""

    def __init__(self, width):
        self.width = width
        self.chunks = []
        self.index = {}          # name -> (row_offset, rows, cols)  (static Python ints)
        self.row = 0

    def add(self, name, arr):
        arr = np.asarray(arr, np.float32)
        if arr.ndim == 1:
            arr = arr[None, :]
        r, c = arr.shape
        assert c <= self.width, (name, arr.shape)
        rp = -(-r // 8) * 8
        buf = np.zeros((rp, self.width), np.float32)
        buf[:r, :c] = arr
        self.index[name] = (self.row, r, c)
        self.chunks.append(buf)
        self.row += rp

    def finish(self):
        return np.concatenate(self.chunks, axis=0), dict(self.index)


def build_model(key):
    """Deterministic init of all module parameters, packed into one slab."""
    keys = jax.random.split(key, 64)
    ki = iter(keys)

    def nrm(shape, scale=0.02):
        return np.asarray(scale * jax.random.normal(next(ki), shape, dtype=jnp.float32))

    H, I, L, NH, hd = HIDDEN, INTERMEDIATE, NUM_LAYERS, NUM_HEADS, HEAD_DIM
    pk = _ParamPacker(PACK_WIDTH)

    # time_embed: Linear(Cm, 4Cm) -> SiLU -> Linear(4Cm, H)
    pk.add("time_w1", nrm((MODEL_CHANNELS, TIME_EMBED_DIM)))
    pk.add("time_b1", np.zeros((1, TIME_EMBED_DIM), np.float32))
    pk.add("time_w2", nrm((TIME_EMBED_DIM, H)))
    pk.add("time_b2", np.zeros((1, H), np.float32))
    # input_up_proj: Linear(Cin, H) -> Tanh -> Linear(H, H)
    pk.add("up_w1", nrm((IN_CHANNELS, H)))
    pk.add("up_b1", np.zeros((1, H), np.float32))
    pk.add("up_w2", nrm((H, H)))
    pk.add("up_b2", np.zeros((1, H), np.float32))
    # embedding LayerNorm
    pk.add("emb_ln_g", np.ones((1, H), np.float32))
    pk.add("emb_ln_b", np.zeros((1, H), np.float32))
    # output_down_proj: Linear(H, H) -> Tanh -> Linear(H, Cout)
    pk.add("down_w1", nrm((H, H)))
    pk.add("down_b1", np.zeros((1, H), np.float32))
    pk.add("down_w2", nrm((H, OUT_CHANNELS)))
    pk.add("down_b2", np.zeros((1, OUT_CHANNELS), np.float32))

    # position / week / hour embedding tables.  The ids are static Python
    # (input_hour=None, input_week=None branch), so the three gathers are
    # hoisted out of the per-call forward and the resulting [S, H] sequence
    # embedding is packed into the slab.
    pos_table = nrm((MAX_POS, H))
    week_table = nrm((NUM_WEEK, H))
    hour_table = nrm((NUM_HOUR, H))
    pos_ids = np.arange(SEQ)
    hour_ids = pos_ids.copy()
    hour_ids[1:] = (hour_ids[1:] - 1) % 24 + 1
    week_ids = pos_ids.copy()
    for i in range(7):
        week_ids[i * 24 + 1:(i + 1) * 24 + 1] = i + 1
    pk.add("seq_emb", pos_table[pos_ids] + week_table[week_ids] + hour_table[hour_ids])

    # BERT encoder layers.  Q/K/V/out-proj weights are split PER HEAD at pack
    # time so the kernel never lane-slices or lane-concats activations.
    for l in range(L):
        wq, wk, wv, wo = nrm((H, H)), nrm((H, H)), nrm((H, H)), nrm((H, H))
        for hh in range(NH):
            cs = slice(hh * hd, (hh + 1) * hd)
            pk.add(f"l{l}_h{hh}_wq", wq[:, cs])
            pk.add(f"l{l}_h{hh}_bq", np.zeros((1, hd), np.float32))
            pk.add(f"l{l}_h{hh}_wk", wk[:, cs])
            pk.add(f"l{l}_h{hh}_bk", np.zeros((1, hd), np.float32))
            pk.add(f"l{l}_h{hh}_wv", wv[:, cs])
            pk.add(f"l{l}_h{hh}_bv", np.zeros((1, hd), np.float32))
            pk.add(f"l{l}_h{hh}_wo", wo[cs, :])
        pk.add(f"l{l}_bo", np.zeros((1, H), np.float32))
        pk.add(f"l{l}_ln1_g", np.ones((1, H), np.float32))
        pk.add(f"l{l}_ln1_b", np.zeros((1, H), np.float32))
        pk.add(f"l{l}_wi", nrm((H, I)))
        pk.add(f"l{l}_bi", np.zeros((1, I), np.float32))
        pk.add(f"l{l}_wo2", nrm((I, H)))
        pk.add(f"l{l}_bo2", np.zeros((1, H), np.float32))
        pk.add(f"l{l}_ln2_g", np.ones((1, H), np.float32))
        pk.add(f"l{l}_ln2_b", np.zeros((1, H), np.float32))

    slab_np, index = pk.finish()
    return jnp.asarray(slab_np), index


# ---------------- in-kernel helpers ----------------
def _ln(x, g, b, eps):
    mu = jnp.mean(x, axis=-1, keepdims=True)
    xc = x - mu
    var = jnp.mean(xc * xc, axis=-1, keepdims=True)
    return xc * jax.lax.rsqrt(var + eps) * g + b


def _gelu_exact(x):   # exact erf-GELU, matches HF BERT "gelu"
    return 0.5 * x * (1.0 + jax.lax.erf(x / jnp.sqrt(jnp.float32(2.0))))


# ---------------- the single fused forward kernel ----------------
def _fused_forward_kernel(slab_ref, t_sin_ref, x_ref, o_ref, *,
                          index, num_heads, num_layers, batch, seq, ln_eps):
    N, S = batch, seq

    def get(name):
        off, r, c = index[name]                 # static Python ints
        return slab_ref[off:off + r, :c]        # sublane-aligned static slice (free)

    # ---- time_embed: Linear -> SiLU -> Linear                [N, Cm] -> [N, H]
    t = t_sin_ref[...]
    th = jnp.dot(t, get("time_w1"), preferred_element_type=jnp.float32) + get("time_b1")
    th = th * jax.nn.sigmoid(th)
    temb = jnp.dot(th, get("time_w2"), preferred_element_type=jnp.float32) + get("time_b2")

    # ---- input_up_proj: Linear -> Tanh -> Linear         [N*S, Cin] -> [N*S, H]
    x = x_ref[...]
    u = jnp.tanh(jnp.dot(x, get("up_w1"), preferred_element_type=jnp.float32) + get("up_b1"))
    emb_x = jnp.dot(u, get("up_w2"), preferred_element_type=jnp.float32) + get("up_b2")
    H = emb_x.shape[-1]

    # ---- emb_inputs = LayerNorm(pos+week+hour + emb_x + time_emb); dropout(p=0)=id
    summed = (emb_x.reshape(N, S, H)
              + get("seq_emb")[None, :, :]
              + temb[:, None, :])
    h = _ln(summed, get("emb_ln_g"), get("emb_ln_b"), ln_eps).reshape(N * S, H)

    hd = H // num_heads
    scale = 1.0 / math.sqrt(hd)

    # ---- BertEncoder (no attention mask: BertEncoder is called with
    #      attention_mask=None in 'lm' mode) ----
    # TODO(synk): for real BERT dims (H=768, I=3072, L=12) this all-resident
    # design must become a layer-gridded pipeline (grid over L, 'arbitrary',
    # stacked weights blocked per layer, h in a VMEM scratch) to fit v7x's
    # 64 MiB VMEM; and a 'parallel' row-tile grid axis once N*S grows.
    for l in range(num_layers):
        attn = None
        for hh in range(num_heads):             # static, tiny head loop; no lane
            pre = f"l{l}_h{hh}_"                # slices or concats inside it.
            q = (jnp.dot(h, get(pre + "wq"), preferred_element_type=jnp.float32)
                 + get(pre + "bq")).reshape(N, S, hd)
            k = (jnp.dot(h, get(pre + "wk"), preferred_element_type=jnp.float32)
                 + get(pre + "bk")).reshape(N, S, hd)
            v = (jnp.dot(h, get(pre + "wv"), preferred_element_type=jnp.float32)
                 + get(pre + "bv")).reshape(N, S, hd)
            s = jnp.einsum("nqd,nkd->nqk", q, k,
                           preferred_element_type=jnp.float32) * scale
            s = s - jnp.max(s, axis=-1, keepdims=True)
            p = jnp.exp(s)
            p = p / jnp.sum(p, axis=-1, keepdims=True)     # exact softmax denom
            ctx = jnp.einsum("nqk,nkd->nqd", p, v,
                             preferred_element_type=jnp.float32).reshape(N * S, hd)
            part = jnp.dot(ctx, get(pre + "wo"), preferred_element_type=jnp.float32)
            attn = part if attn is None else attn + part   # == concat(ctx_h) @ Wo
        attn = attn + get(f"l{l}_bo")
        h1 = _ln(attn + h, get(f"l{l}_ln1_g"), get(f"l{l}_ln1_b"), ln_eps)

        inter = _gelu_exact(
            jnp.dot(h1, get(f"l{l}_wi"), preferred_element_type=jnp.float32)
            + get(f"l{l}_bi"))
        ffn = jnp.dot(inter, get(f"l{l}_wo2"),
                      preferred_element_type=jnp.float32) + get(f"l{l}_bo2")
        h = _ln(ffn + h1, get(f"l{l}_ln2_g"), get(f"l{l}_ln2_b"), ln_eps)

    # ---- output_down_proj: Linear -> Tanh -> Linear     [N*S, H] -> [N*S, Cout]
    d = jnp.tanh(jnp.dot(h, get("down_w1"), preferred_element_type=jnp.float32)
                 + get("down_b1"))
    out = jnp.dot(d, get("down_w2"), preferred_element_type=jnp.float32) + get("down_b2")
    o_ref[...] = out.astype(o_ref.dtype)


# ---------------- pallas_call wrapper ----------------
def _cost_estimate(slab_elems):
    N, S, NS = BATCH, SEQ, BATCH * SEQ
    H, I, hd, NH, L = HIDDEN, INTERMEDIATE, HEAD_DIM, NUM_HEADS, NUM_LAYERS
    macs = (N * MODEL_CHANNELS * TIME_EMBED_DIM + N * TIME_EMBED_DIM * H        # time MLP
            + NS * IN_CHANNELS * H + NS * H * H                                 # up proj
            + L * (NH * (3 * NS * H * hd + 2 * N * S * S * hd + NS * hd * H)    # attention
                   + 2 * NS * H * I)                                            # FFN
            + NS * H * H + NS * H * OUT_CHANNELS)                               # down proj
    trans = (N * TIME_EMBED_DIM + 2 * NS * H
             + L * (NH * N * S * S + NS * I))
    bytes_acc = 4 * (slab_elems + N * MODEL_CHANNELS + NS * IN_CHANNELS
                     + NS * OUT_CHANNELS)
    return pl.CostEstimate(flops=2 * macs, transcendentals=trans,
                           bytes_accessed=bytes_acc)


def fused_forward(slab, t_sin, x2d, index, *, batch, seq):
    NS = x2d.shape[0]
    kernel = functools.partial(
        _fused_forward_kernel, index=index, num_heads=NUM_HEADS,
        num_layers=NUM_LAYERS, batch=batch, seq=seq, ln_eps=LN_EPS)
    vmem = pl.BlockSpec(memory_space=pltpu.MemorySpace.VMEM)
    return pl.pallas_call(
        kernel,
        out_shape=jax.ShapeDtypeStruct((NS, OUT_CHANNELS), jnp.float32),
        in_specs=[vmem, vmem, vmem],
        out_specs=pl.BlockSpec(memory_space=pltpu.MemorySpace.VMEM),
        cost_estimate=_cost_estimate(int(slab.size)),
    )(slab, t_sin, x2d)


# ---------------- glue: sinusoidal timestep embedding (fused by jit) ----------------
def timestep_embedding(timesteps, dim, max_period=10000):
    half = dim // 2
    freqs = jnp.exp(
        -math.log(max_period) * jnp.arange(half, dtype=jnp.float32) / half)
    args = timesteps[:, None].astype(jnp.float32) * freqs[None]
    emb = jnp.concatenate([jnp.cos(args), jnp.sin(args)], axis=-1)
    if dim % 2:
        emb = jnp.concatenate([emb, jnp.zeros_like(emb[:, :1])], axis=-1)
    return emb


# ---------------- full forward (matches TransformerNetModel2.forward, lm mode) ----------------
def make_forward(index):
    @jax.jit
    def forward(slab, x, timesteps):
        N, S, Cin = x.shape
        t_sin = timestep_embedding(timesteps, MODEL_CHANNELS)
        out2d = fused_forward(slab, t_sin, x.reshape(N * S, Cin), index,
                              batch=N, seq=S)
        return out2d.reshape(N, S, OUT_CHANNELS).astype(x.dtype)
    return forward


# TODO(synk): conditional_gen branch (cross-attention over src_ids), class-conditional
# label_emb, and word_embedding/lm_head (get_embeds/get_logits) are not exercised in
# 'lm' / num_classes=None forward() and are omitted.

if __name__ == "__main__":
    key = jax.random.PRNGKey(0)
    kp, kx, kt = jax.random.split(key, 3)
    slab, index = build_model(kp)
    forward = make_forward(index)

    x = jax.random.normal(kx, (BATCH, SEQ, IN_CHANNELS), dtype=jnp.float32)
    timesteps = jax.random.randint(kt, (BATCH,), 0, 1000).astype(jnp.float32)

    out = forward(slab, x, timesteps)
    out = jax.block_until_ready(out)
    assert out.shape == (BATCH, SEQ, OUT_CHANNELS), out.shape
    assert out.dtype == x.dtype
    assert bool(jnp.all(jnp.isfinite(out)))
    print("KERNEL_OK")
</pallas_src>

<mosaic_0001>
module attributes {stable_mosaic.version = 11 : i64} {
  func.func @_fused_forward_kernel(%arg0: memref<1112x64xf32, #tpu.memory_space<vmem>>, %arg1: memref<2x16xf32, #tpu.memory_space<vmem>>, %arg2: memref<16x16xf32, #tpu.memory_space<vmem>>, %arg3: memref<16x16xf32, #tpu.memory_space<vmem>>) attributes {dimension_semantics = [], scalar_prefetch = 0 : i64, scratch_operands = 0 : i64, tpu.core_type = #tpu.core_type<tc>} {
    %c0 = arith.constant 0 : index
    %c0_0 = arith.constant 0 : index
    %0 = vector.load %arg1[%c0, %c0_0] : memref<2x16xf32, #tpu.memory_space<vmem>>, vector<2x16xf32>
    %c0_1 = arith.constant 0 : index
    %c0_2 = arith.constant 0 : index
    %1 = vector.load %arg0[%c0_1, %c0_2] : memref<1112x64xf32, #tpu.memory_space<vmem>>, vector<16x64xf32>
    %cst = arith.constant dense<0.000000e+00> : vector<2x64xf32>
    %2 = tpu.matmul %0, %1, %cst {dimension_numbers = #tpu.dot_dimension_numbers<[1], [0], [0], [1], [0, 0, 1, 1], [], []>} : vector<2x16xf32>, vector<16x64xf32>, vector<2x64xf32> -> vector<2x64xf32>
    %c16 = arith.constant 16 : index
    %c0_3 = arith.constant 0 : index
    %3 = vector.load %arg0[%c16, %c0_3] : memref<1112x64xf32, #tpu.memory_space<vmem>>, vector<1x64xf32>
    %4 = vector.broadcast %3 : vector<1x64xf32> to vector<2x64xf32>
    %5 = arith.addf %2, %4 : vector<2x64xf32>
    %6 = arith.negf %5 : vector<2x64xf32>
    %7 = math.exp %6 : vector<2x64xf32>
    %cst_4 = arith.constant 1.000000e+00 : f32
    %8 = vector.broadcast %cst_4 : f32 to vector<2x64xf32>
    %9 = arith.addf %8, %7 : vector<2x64xf32>
    %10 = arith.divf %8, %9 : vector<2x64xf32>
    %11 = arith.mulf %5, %10 : vector<2x64xf32>
    %c24 = arith.constant 24 : index
    %c0_5 = arith.constant 0 : index
    %12 = vector.load %arg0[%c24, %c0_5] : memref<1112x64xf32, #tpu.memory_space<vmem>>, vector<64x32xf32>
    %cst_6 = arith.constant dense<0.000000e+00> : vector<2x32xf32>
    %13 = tpu.matmul %11, %12, %cst_6 {dimension_numbers = #tpu.dot_dimension_numbers<[1], [0], [0], [1], [0, 0, 1, 1], [], []>} : vector<2x64xf32>, vector<64x32xf32>, vector<2x32xf32> -> vector<2x32xf32>
    %c88 = arith.constant 88 : index
    %c0_7 = arith.constant 0 : index
    %14 = vector.load %arg0[%c88, %c0_7] : memref<1112x64xf32, #tpu.memory_space<vmem>>, vector<1x32xf32>
    %15 = vector.broadcast %14 : vector<1x32xf32> to vector<2x32xf32>
    %16 = arith.addf %13, %15 : vector<2x32xf32>
    %c0_8 = arith.constant 0 : index
    %c0_9 = arith.constant 0 : index
    %17 = vector.load %arg2[%c0_8, %c0_9] : memref<16x16xf32, #tpu.memory_space<vmem>>, vector<16x16xf32>
    %c96 = arith.constant 96 : index
    %c0_10 = arith.constant 0 : index
    %18 = vector.load %arg0[%c96, %c0_10] : memref<1112x64xf32, #tpu.memory_space<vmem>>, vector<16x32xf32>
    %cst_11 = arith.constant dense<0.000000e+00> : vector<16x32xf32>
    %19 = tpu.matmul %17, %18, %cst_11 {dimension_numbers = #tpu.dot_dimension_numbers<[1], [0], [0], [1], [0, 0, 1, 1], [], []>} : vector<16x16xf32>, vector<16x32xf32>, vector<16x32xf32> -> vector<16x32xf32>
    %c112 = arith.constant 112 : index
    %c0_12 = arith.constant 0 : index
    %20 = vector.load %arg0[%c112, %c0_12] : memref<1112x64xf32, #tpu.memory_space<vmem>>, vector<1x32xf32>
    %21 = vector.broadcast %20 : vector<1x32xf32> to vector<16x32xf32>
    %22 = arith.addf %19, %21 : vector<16x32xf32>
    %23 = math.tanh %22 : vector<16x32xf32>
    %c120 = arith.constant 120 : index
    %c0_13 = arith.constant 0 : index
    %24 = vector.load %arg0[%c120, %c0_13] : memref<1112x64xf32, #tpu.memory_space<vmem>>, vector<32x32xf32>
    %cst_14 = arith.constant dense<0.000000e+00> : vector<16x32xf32>
    %25 = tpu.matmul %23, %24, %cst_14 {dimension_numbers = #tpu.dot_dimension_numbers<[1], [0], [0], [1], [0, 0, 1, 1], [], []>} : vector<16x32xf32>, vector<32x32xf32>, vector<16x32xf32> -> vector<16x32xf32>
    %c152 = arith.constant 152 : index
    %c0_15 = arith.constant 0 : index
    %26 = vector.load %arg0[%c152, %c0_15] : memref<1112x64xf32, #tpu.memory_space<vmem>>, vector<1x32xf32>
    %27 = vector.broadcast %26 : vector<1x32xf32> to vector<16x32xf32>
    %28 = arith.addf %25, %27 : vector<16x32xf32>
    %29 = vector.shape_cast %28 : vector<16x32xf32> to vector<2x8x32xf32>
    %c256 = arith.constant 256 : index
    %c0_16 = arith.constant 0 : index
    %30 = vector.load %arg0[%c256, %c0_16] : memref<1112x64xf32, #tpu.memory_space<vmem>>, vector<8x32xf32>
    %31 = vector.shape_cast %30 : vector<8x32xf32> to vector<1x8x32xf32>
    %32 = vector.broadcast %31 : vector<1x8x32xf32> to vector<2x8x32xf32>
    %33 = arith.addf %29, %32 : vector<2x8x32xf32>
    %34 = vector.shape_cast %16 : vector<2x32xf32> to vector<2x1x32xf32>
    %35 = vector.broadcast %34 : vector<2x1x32xf32> to vector<2x8x32xf32>
    %36 = arith.addf %33, %35 : vector<2x8x32xf32>
    %c160 = arith.constant 160 : index
    %c0_17 = arith.constant 0 : index
    %37 = vector.load %arg0[%c160, %c0_17] : memref<1112x64xf32, #tpu.memory_space<vmem>>, vector<1x32xf32>
    %c168 = arith.constant 168 : index
    %c0_18 = arith.constant 0 : index
    %38 = vector.load %arg0[%c168, %c0_18] : memref<1112x64xf32, #tpu.memory_space<vmem>>, vector<1x32xf32>
    %cst_19 = arith.constant dense<0.000000e+00> : vector<2x8xf32>
    %39 = vector.multi_reduction <add>, %36, %cst_19 [2] : vector<2x8x32xf32> to vector<2x8xf32>
    %40 = vector.shape_cast %39 : vector<2x8xf32> to vector<2x8x1xf32>
    %cst_20 = arith.constant 3.200000e+01 : f32
    %41 = vector.broadcast %cst_20 : f32 to vector<2x8x1xf32>
    %42 = arith.divf %40, %41 : vector<2x8x1xf32>
    %43 = vector.broadcast %42 : vector<2x8x1xf32> to vector<2x8x32xf32>
    %44 = arith.subf %36, %43 : vector<2x8x32xf32>
    %45 = arith.mulf %44, %44 : vector<2x8x32xf32>
    %cst_21 = arith.constant dense<0.000000e+00> : vector<2x8xf32>
    %46 = vector.multi_reduction <add>, %45, %cst_21 [2] : vector<2x8x32xf32> to vector<2x8xf32>
    %47 = vector.shape_cast %46 : vector<2x8xf32> to vector<2x8x1xf32>
    %cst_22 = arith.constant 3.200000e+01 : f32
    %48 = vector.broadcast %cst_22 : f32 to vector<2x8x1xf32>
    %49 = arith.divf %47, %48 : vector<2x8x1xf32>
    %cst_23 = arith.constant 9.99999996E-13 : f32
    %50 = vector.broadcast %cst_23 : f32 to vector<2x8x1xf32>
    %51 = arith.addf %49, %50 : vector<2x8x1xf32>
    %52 = math.rsqrt %51 : vector<2x8x1xf32>
    %53 = vector.broadcast %52 : vector<2x8x1xf32> to vector<2x8x32xf32>
    %54 = arith.mulf %44, %53 : vector<2x8x32xf32>
    %55 = vector.shape_cast %37 : vector<1x32xf32> to vector<1x1x32xf32>
    %56 = vector.broadcast %55 : vector<1x1x32xf32> to vector<2x8x32xf32>
    %57 = arith.mulf %54, %56 : vector<2x8x32xf32>
    %58 = vector.shape_cast %38 : vector<1x32xf32> to vector<1x1x32xf32>
    %59 = vector.broadcast %58 : vector<1x1x32xf32> to vector<2x8x32xf32>
    %60 = arith.addf %57, %59 : vector<2x8x32xf32>
    %61 = vector.shape_cast %60 : vector<2x8x32xf32> to vector<16x32xf32>
    %c264 = arith.constant 264 : index
    %c0_24 = arith.constant 0 : index
    %62 = vector.load %arg0[%c264, %c0_24] : memref<1112x64xf32, #tpu.memory_space<vmem>>, vector<32x16xf32>
    %cst_25 = arith.constant dense<0.000000e+00> : vector<16x16xf32>
    %63 = tpu.matmul %61, %62, %cst_25 {dimension_numbers = #tpu.dot_dimension_numbers<[1], [0], [0], [1], [0, 0, 1, 1], [], []>} : vector<16x32xf32>, vector<32x16xf32>, vector<16x16xf32> -> vector<16x16xf32>
    %c296 = arith.constant 296 : index
    %c0_26 = arith.constant 0 : index
    %64 = vector.load %arg0[%c296, %c0_26] : memref<1112x64xf32, #tpu.memory_space<vmem>>, vector<1x16xf32>
    %65 = vector.broadcast %64 : vector<1x16xf32> to vector<16x16xf32>
    %66 = arith.addf %63, %65 : vector<16x16xf32>
    %67 = vector.shape_cast %66 : vector<16x16xf32> to vector<2x8x16xf32>
    %c304 = arith.constant 304 : index
    %c0_27 = arith.constant 0 : index
    %68 = vector.load %arg0[%c304, %c0_27] : memref<1112x64xf32, #tpu.memory_space<vmem>>, vector<32x16xf32>
    %cst_28 = arith.constant dense<0.000000e+00> : vector<16x16xf32>
    %69 = tpu.matmul %61, %68, %cst_28 {dimension_numbers = #tpu.dot_dimension_numbers<[1], [0], [0], [1], [0, 0, 1, 1], [], []>} : vector<16x32xf32>, vector<32x16xf32>, vector<16x16xf32> -> vector<16x16xf32>
    %c336 = arith.constant 336 : index
    %c0_29 = arith.constant 0 : index
    %70 = vector.load %arg0[%c336, %c0_29] : memref<1112x64xf32, #tpu.memory_space<vmem>>, vector<1x16xf32>
    %71 = vector.broadcast %70 : vector<1x16xf32> to vector<16x16xf32>
    %72 = arith.addf %69, %71 : vector<16x16xf32>
    %73 = vector.shape_cast %72 : vector<16x16xf32> to vector<2x8x16xf32>
    %c344 = arith.constant 344 : index
    %c0_30 = arith.constant 0 : index
    %74 = vector.load %arg0[%c344, %c0_30] : memref<1112x64xf32, #tpu.memory_space<vmem>>, vector<32x16xf32>
    %cst_31 = arith.constant dense<0.000000e+00> : vector<16x16xf32>
    %75 = tpu.matmul %61, %74, %cst_31 {dimension_numbers = #tpu.dot_dimension_numbers<[1], [0], [0], [1], [0, 0, 1, 1], [], []>} : vector<16x32xf32>, vector<32x16xf32>, vector<16x16xf32> -> vector<16x16xf32>
    %c376 = arith.constant 376 : index
    %c0_32 = arith.constant 0 : index
    %76 = vector.load %arg0[%c376, %c0_32] : memref<1112x64xf32, #tpu.memory_space<vmem>>, vector<1x16xf32>
    %77 = vector.broadcast %76 : vector<1x16xf32> to vector<16x16xf32>
    %78 = arith.addf %75, %77 : vector<16x16xf32>
    %79 = vector.shape_cast %78 : vector<16x16xf32> to vector<2x8x16xf32>
    "tpu.trace_start"() <{level = 10 : i32, message = "nqd,nkd->nqk"}> : () -> ()
    %cst_33 = arith.constant dense<0.000000e+00> : vector<2x8x8xf32>
    %80 = tpu.matmul %67, %73, %cst_33 {dimension_numbers = #tpu.dot_dimension_numbers<[2], [2], [1], [1], [0, 0, 0, 1, 1, 1], [0], [0]>} : vector<2x8x16xf32>, vector<2x8x16xf32>, vector<2x8x8xf32> -> vector<2x8x8xf32>
    "tpu.trace_stop"() : () -> ()
    %cst_34 = arith.constant 2.500000e-01 : f32
    %81 = vector.broadcast %cst_34 : f32 to vector<2x8x8xf32>
    %82 = arith.mulf %80, %81 : vector<2x8x8xf32>
    %cst_35 = arith.constant dense<0xFF800000> : vector<2x8xf32>
    %83 = vector.multi_reduction <maximumf>, %82, %cst_35 [2] : vector<2x8x8xf32> to vector<2x8xf32>
    %84 = vector.shape_cast %83 : vector<2x8xf32> to vector<2x8x1xf32>
    %85 = vector.broadcast %84 : vector<2x8x1xf32> to vector<2x8x8xf32>
    %86 = arith.subf %82, %85 : vector<2x8x8xf32>
    %87 = math.exp %86 : vector<2x8x8xf32>
    %cst_36 = arith.constant dense<0.000000e+00> : vector<2x8xf32>
    %88 = vector.multi_reduction <add>, %87, %cst_36 [2] : vector<2x8x8xf32> to vector<2x8xf32>
    %89 = vector.shape_cast %88 : vector<2x8xf32> to vector<2x8x1xf32>
    %90 = vector.broadcast %89 : vector<2x8x1xf32> to vector<2x8x8xf32>
    %91 = arith.divf %87, %90 : vector<2x8x8xf32>
    "tpu.trace_start"() <{level = 10 : i32, message = "nqk,nkd->nqd"}> : () -> ()
    %cst_37 = arith.constant dense<0.000000e+00> : vector<2x8x16xf32>
    %92 = tpu.matmul %91, %79, %cst_37 {dimension_numbers = #tpu.dot_dimension_numbers<[2], [1], [1], [2], [0, 0, 0, 1, 1, 2], [0], [0]>} : vector<2x8x8xf32>, vector<2x8x16xf32>, vector<2x8x16xf32> -> vector<2x8x16xf32>
    "tpu.trace_stop"() : () -> ()
    %93 = vector.shape_cast %92 : vector<2x8x16xf32> to vector<16x16xf32>
    %c384 = arith.constant 384 : index
    %c0_38 = arith.constant 0 : index
    %94 = vector.load %arg0[%c384, %c0_38] : memref<1112x64xf32, #tpu.memory_space<vmem>>, vector<16x32xf32>
    %cst_39 = arith.constant dense<0.000000e+00> : vector<16x32xf32>
    %95 = tpu.matmul %93, %94, %cst_39 {dimension_numbers = #tpu.dot_dimension_numbers<[1], [0], [0], [1], [0, 0, 1, 1], [], []>} : vector<16x16xf32>, vector<16x32xf32>, vector<16x32xf32> -> vector<16x32xf32>
    %c400 = arith.constant 400 : index
    %c0_40 = arith.constant 0 : index
    %96 = vector.load %arg0[%c400, %c0_40] : memref<1112x64xf32, #tpu.memory_space<vmem>>, vector<32x16xf32>
    %cst_41 = arith.constant dense<0.000000e+00> : vector<16x16xf32>
    %97 = tpu.matmul %61, %96, %cst_41 {dimension_numbers = #tpu.dot_dimension_numbers<[1], [0], [0], [1], [0, 0, 1, 1], [], []>} : vector<16x32xf32>, vector<32x16xf32>, vector<16x16xf32> -> vector<16x16xf32>
    %c432 = arith.constant 432 : index
    %c0_42 = arith.constant 0 : index
    %98 = vector.load %arg0[%c432, %c0_42] : memref<1112x64xf32, #tpu.memory_space<vmem>>, vector<1x16xf32>
    %99 = vector.broadcast %98 : vector<1x16xf32> to vector<16x16xf32>
    %100 = arith.addf %97, %99 : vector<16x16xf32>
    %101 = vector.shape_cast %100 : vector<16x16xf32> to vector<2x8x16xf32>
    %c440 = arith.constant 440 : index
    %c0_43 = arith.constant 0 : index
    %102 = vector.load %arg0[%c440, %c0_43] : memref<1112x64xf32, #tpu.memory_space<vmem>>, vector<32x16xf32>
    %cst_44 = arith.constant dense<0.000000e+00> : vector<16x16xf32>
    %103 = tpu.matmul %61, %102, %cst_44 {dimension_numbers = #tpu.dot_dimension_numbers<[1], [0], [0], [1], [0, 0, 1, 1], [], []>} : vector<16x32xf32>, vector<32x16xf32>, vector<16x16xf32> -> vector<16x16xf32>
    %c472 = arith.constant 472 : index
    %c0_45 = arith.constant 0 : index
    %104 = vector.load %arg0[%c472, %c0_45] : memref<1112x64xf32, #tpu.memory_space<vmem>>, vector<1x16xf32>
    %105 = vector.broadcast %104 : vector<1x16xf32> to vector<16x16xf32>
    %106 = arith.addf %103, %105 : vector<16x16xf32>
    %107 = vector.shape_cast %106 : vector<16x16xf32> to vector<2x8x16xf32>
    %c480 = arith.constant 480 : index
    %c0_46 = arith.constant 0 : index
    %108 = vector.load %arg0[%c480, %c0_46] : memref<1112x64xf32, #tpu.memory_space<vmem>>, vector<32x16xf32>
    %cst_47 = arith.constant dense<0.000000e+00> : vector<16x16xf32>
    %109 = tpu.matmul %61, %108, %cst_47 {dimension_numbers = #tpu.dot_dimension_numbers<[1], [0], [0], [1], [0, 0, 1, 1], [], []>} : vector<16x32xf32>, vector<32x16xf32>, vector<16x16xf32> -> vector<16x16xf32>
    %c512 = arith.constant 512 : index
    %c0_48 = arith.constant 0 : index
    %110 = vector.load %arg0[%c512, %c0_48] : memref<1112x64xf32, #tpu.memory_space<vmem>>, vector<1x16xf32>
    %111 = vector.broadcast %110 : vector<1x16xf32> to vector<16x16xf32>
    %112 = arith.addf %109, %111 : vector<16x16xf32>
    %113 = vector.shape_cast %112 : vector<16x16xf32> to vector<2x8x16xf32>
    "tpu.trace_start"() <{level = 10 : i32, message = "nqd,nkd->nqk"}> : () -> ()
    %cst_49 = arith.constant dense<0.000000e+00> : vector<2x8x8xf32>
    %114 = tpu.matmul %101, %107, %cst_49 {dimension_numbers = #tpu.dot_dimension_numbers<[2], [2], [1], [1], [0, 0, 0, 1, 1, 1], [0], [0]>} : vector<2x8x16xf32>, vector<2x8x16xf32>, vector<2x8x8xf32> -> vector<2x8x8xf32>
    "tpu.trace_stop"() : () -> ()
    %cst_50 = arith.constant 2.500000e-01 : f32
    %115 = vector.broadcast %cst_50 : f32 to vector<2x8x8xf32>
    %116 = arith.mulf %114, %115 : vector<2x8x8xf32>
    %cst_51 = arith.constant dense<0xFF800000> : vector<2x8xf32>
    %117 = vector.multi_reduction <maximumf>, %116, %cst_51 [2] : vector<2x8x8xf32> to vector<2x8xf32>
    %118 = vector.shape_cast %117 : vector<2x8xf32> to vector<2x8x1xf32>
    %119 = vector.broadcast %118 : vector<2x8x1xf32> to vector<2x8x8xf32>
    %120 = arith.subf %116, %119 : vector<2x8x8xf32>
    %121 = math.exp %120 : vector<2x8x8xf32>
    %cst_52 = arith.constant dense<0.000000e+00> : vector<2x8xf32>
    %122 = vector.multi_reduction <add>, %121, %cst_52 [2] : vector<2x8x8xf32> to vector<2x8xf32>
    %123 = vector.shape_cast %122 : vector<2x8xf32> to vector<2x8x1xf32>
    %124 = vector.broadcast %123 : vector<2x8x1xf32> to vector<2x8x8xf32>
    %125 = arith.divf %121, %124 : vector<2x8x8xf32>
    "tpu.trace_start"() <{level = 10 : i32, message = "nqk,nkd->nqd"}> : () -> ()
    %cst_53 = arith.constant dense<0.000000e+00> : vector<2x8x16xf32>
    %126 = tpu.matmul %125, %113, %cst_53 {dimension_numbers = #tpu.dot_dimension_numbers<[2], [1], [1], [2], [0, 0, 0, 1, 1, 2], [0], [0]>} : vector<2x8x8xf32>, vector<2x8x16xf32>, vector<2x8x16xf32> -> vector<2x8x16xf32>
    "tpu.trace_stop"() : () -> ()
    %127 = vector.shape_cast %126 : vector<2x8x16xf32> to vector<16x16xf32>
    %c520 = arith.constant 520 : index
    %c0_54 = arith.constant 0 : index
    %128 = vector.load %arg0[%c520, %c0_54] : memref<1112x64xf32, #tpu.memory_space<vmem>>, vector<16x32xf32>
    %cst_55 = arith.constant dense<0.000000e+00> : vector<16x32xf32>
    %129 = tpu.matmul %127, %128, %cst_55 {dimension_numbers = #tpu.dot_dimension_numbers<[1], [0], [0], [1], [0, 0, 1, 1], [], []>} : vector<16x16xf32>, vector<16x32xf32>, vector<16x32xf32> -> vector<16x32xf32>
    %130 = arith.addf %95, %129 : vector<16x32xf32>
    %c536 = arith.constant 536 : index
    %c0_56 = arith.constant 0 : index
    %131 = vector.load %arg0[%c536, %c0_56] : memref<1112x64xf32, #tpu.memory_space<vmem>>, vector<1x32xf32>
    %132 = vector.broadcast %131 : vector<1x32xf32> to vector<16x32xf32>
    %133 = arith.addf %130, %132 : vector<16x32xf32>
    %134 = arith.addf %133, %61 : vector<16x32xf32>
    %c544 = arith.constant 544 : index
    %c0_57 = arith.constant 0 : index
    %135 = vector.load %arg0[%c544, %c0_57] : memref<1112x64xf32, #tpu.memory_space<vmem>>, vector<1x32xf32>
    %c552 = arith.constant 552 : index
    %c0_58 = arith.constant 0 : index
    %136 = vector.load %arg0[%c552, %c0_58] : memref<1112x64xf32, #tpu.memory_space<vmem>>, vector<1x32xf32>
    %cst_59 = arith.constant dense<0.000000e+00> : vector<16xf32>
    %137 = vector.multi_reduction <add>, %134, %cst_59 [1] : vector<16x32xf32> to vector<16xf32>
    %138 = vector.shape_cast %137 : vector<16xf32> to vector<16x1xf32>
    %cst_60 = arith.constant 3.200000e+01 : f32
    %139 = vector.broadcast %cst_60 : f32 to vector<16x1xf32>
    %140 = arith.divf %138, %139 : vector<16x1xf32>
    %141 = vector.broadcast %140 : vector<16x1xf32> to vector<16x32xf32>
    %142 = arith.subf %134, %141 : vector<16x32xf32>
    %143 = arith.mulf %142, %142 : vector<16x32xf32>
    %cst_61 = arith.constant dense<0.000000e+00> : vector<16xf32>
    %144 = vector.multi_reduction <add>, %143, %cst_61 [1] : vector<16x32xf32> to vector<16xf32>
    %145 = vector.shape_cast %144 : vector<16xf32> to vector<16x1xf32>
    %cst_62 = arith.constant 3.200000e+01 : f32
    %146 = vector.broadcast %cst_62 : f32 to vector<16x1xf32>
    %147 = arith.divf %145, %146 : vector<16x1xf32>
    %cst_63 = arith.constant 9.99999996E-13 : f32
    %148 = vector.broadcast %cst_63 : f32 to vector<16x1xf32>
    %149 = arith.addf %147, %148 : vector<16x1xf32>
    %150 = math.rsqrt %149 : vector<16x1xf32>
    %151 = vector.broadcast %150 : vector<16x1xf32> to vector<16x32xf32>
    %152 = arith.mulf %142, %151 : vector<16x32xf32>
    %153 = vector.broadcast %135 : vector<1x32xf32> to vector<16x32xf32>
    %154 = arith.mulf %152, %153 : vector<16x32xf32>
    %155 = vector.broadcast %136 : vector<1x32xf32> to vector<16x32xf32>
    %156 = arith.addf %154, %155 : vector<16x32xf32>
    %c560 = arith.constant 560 : index
    %c0_64 = arith.constant 0 : index
    %157 = vector.load %arg0[%c560, %c0_64] : memref<1112x64xf32, #tpu.memory_space<vmem>>, vector<32x64xf32>
    %cst_65 = arith.constant dense<0.000000e+00> : vector<16x64xf32>
    %158 = tpu.matmul %156, %157, %cst_65 {dimension_numbers = #tpu.dot_dimension_numbers<[1], [0], [0], [1], [0, 0, 1, 1], [], []>} : vector<16x32xf32>, vector<32x64xf32>, vector<16x64xf32> -> vector<16x64xf32>
    %c592 = arith.constant 592 : index
    %c0_66 = arith.constant 0 : index
    %159 = vector.load %arg0[%c592, %c0_66] : memref<1112x64xf32, #tpu.memory_space<vmem>>, vector<1x64xf32>
    %160 = vector.broadcast %159 : vector<1x64xf32> to vector<16x64xf32>
    %161 = arith.addf %158, %160 : vector<16x64xf32>
    %cst_67 = arith.constant 5.000000e-01 : f32
    %162 = vector.broadcast %cst_67 : f32 to vector<16x64xf32>
    %163 = arith.mulf %162, %161 : vector<16x64xf32>
    %cst_68 = arith.constant 2.000000e+00 : f32
    %164 = math.sqrt %cst_68 : f32
    %165 = vector.broadcast %164 : f32 to vector<16x64xf32>
    %166 = arith.divf %161, %165 : vector<16x64xf32>
    %167 = math.erf %166 : vector<16x64xf32>
    %cst_69 = arith.constant 1.000000e+00 : f32
    %168 = vector.broadcast %cst_69 : f32 to vector<16x64xf32>
    %169 = arith.addf %168, %167 : vector<16x64xf32>
    %170 = arith.mulf %163, %169 : vector<16x64xf32>
    %c600 = arith.constant 600 : index
    %c0_70 = arith.constant 0 : index
    %171 = vector.load %arg0[%c600, %c0_70] : memref<1112x64xf32, #tpu.memory_space<vmem>>, vector<64x32xf32>
    %cst_71 = arith.constant dense<0.000000e+00> : vector<16x32xf32>
    %172 = tpu.matmul %170, %171, %cst_71 {dimension_numbers = #tpu.dot_dimension_numbers<[1], [0], [0], [1], [0, 0, 1, 1], [], []>} : vector<16x64xf32>, vector<64x32xf32>, vector<16x32xf32> -> vector<16x32xf32>
    %c664 = arith.constant 664 : index
    %c0_72 = arith.constant 0 : index
    %173 = vector.load %arg0[%c664, %c0_72] : memref<1112x64xf32, #tpu.memory_space<vmem>>, vector<1x32xf32>
    %174 = vector.broadcast %173 : vector<1x32xf32> to vector<16x32xf32>
    %175 = arith.addf %172, %174 : vector<16x32xf32>
    %176 = arith.addf %175, %156 : vector<16x32xf32>
    %c672 = arith.constant 672 : index
    %c0_73 = arith.constant 0 : index
    %177 = vector.load %arg0[%c672, %c0_73] : memref<1112x64xf32, #tpu.memory_space<vmem>>, vector<1x32xf32>
    %c680 = arith.constant 680 : index
    %c0_74 = arith.constant 0 : index
    %178 = vector.load %arg0[%c680, %c0_74] : memref<1112x64xf32, #tpu.memory_space<vmem>>, vector<1x32xf32>
    %cst_75 = arith.constant dense<0.000000e+00> : vector<16xf32>
    %179 = vector.multi_reduction <add>, %176, %cst_75 [1] : vector<16x32xf32> to vector<16xf32>
    %180 = vector.shape_cast %179 : vector<16xf32> to vector<16x1xf32>
    %cst_76 = arith.constant 3.200000e+01 : f32
    %181 = vector.broadcast %cst_76 : f32 to vector<16x1xf32>
    %182 = arith.divf %180, %181 : vector<16x1xf32>
    %183 = vector.broadcast %182 : vector<16x1xf32> to vector<16x32xf32>
    %184 = arith.subf %176, %183 : vector<16x32xf32>
    %185 = arith.mulf %184, %184 : vector<16x32xf32>
    %cst_77 = arith.constant dense<0.000000e+00> : vector<16xf32>
    %186 = vector.multi_reduction <add>, %185, %cst_77 [1] : vector<16x32xf32> to vector<16xf32>
    %187 = vector.shape_cast %186 : vector<16xf32> to vector<16x1xf32>
    %cst_78 = arith.constant 3.200000e+01 : f32
    %188 = vector.broadcast %cst_78 : f32 to vector<16x1xf32>
    %189 = arith.divf %187, %188 : vector<16x1xf32>
    %cst_79 = arith.constant 9.99999996E-13 : f32
    %190 = vector.broadcast %cst_79 : f32 to vector<16x1xf32>
    %191 = arith.addf %189, %190 : vector<16x1xf32>
    %192 = math.rsqrt %191 : vector<16x1xf32>
    %193 = vector.broadcast %192 : vector<16x1xf32> to vector<16x32xf32>
    %194 = arith.mulf %184, %193 : vector<16x32xf32>
    %195 = vector.broadcast %177 : vector<1x32xf32> to vector<16x32xf32>
    %196 = arith.mulf %194, %195 : vector<16x32xf32>
    %197 = vector.broadcast %178 : vector<1x32xf32> to vector<16x32xf32>
    %198 = arith.addf %196, %197 : vector<16x32xf32>
    %c688 = arith.constant 688 : index
    %c0_80 = arith.constant 0 : index
    %199 = vector.load %arg0[%c688, %c0_80] : memref<1112x64xf32, #tpu.memory_space<vmem>>, vector<32x16xf32>
    %cst_81 = arith.constant dense<0.000000e+00> : vector<16x16xf32>
    %200 = tpu.matmul %198, %199, %cst_81 {dimension_numbers = #tpu.dot_dimension_numbers<[1], [0], [0], [1], [0, 0, 1, 1], [], []>} : vector<16x32xf32>, vector<32x16xf32>, vector<16x16xf32> -> vector<16x16xf32>
    %c720 = arith.constant 720 : index
    %c0_82 = arith.constant 0 : index
    %201 = vector.load %arg0[%c720, %c0_82] : memref<1112x64xf32, #tpu.memory_space<vmem>>, vector<1x16xf32>
    %202 = vector.broadcast %201 : vector<1x16xf32> to vector<16x16xf32>
    %203 = arith.addf %200, %202 : vector<16x16xf32>
    %204 = vector.shape_cast %203 : vector<16x16xf32> to vector<2x8x16xf32>
    %c728 = arith.constant 728 : index
    %c0_83 = arith.constant 0 : index
    %205 = vector.load %arg0[%c728, %c0_83] : memref<1112x64xf32, #tpu.memory_space<vmem>>, vector<32x16xf32>
    %cst_84 = arith.constant dense<0.000000e+00> : vector<16x16xf32>
    %206 = tpu.matmul %198, %205, %cst_84 {dimension_numbers = #tpu.dot_dimension_numbers<[1], [0], [0], [1], [0, 0, 1, 1], [], []>} : vector<16x32xf32>, vector<32x16xf32>, vector<16x16xf32> -> vector<16x16xf32>
    %c760 = arith.constant 760 : index
    %c0_85 = arith.constant 0 : index
    %207 = vector.load %arg0[%c760, %c0_85] : memref<1112x64xf32, #tpu.memory_space<vmem>>, vector<1x16xf32>
    %208 = vector.broadcast %207 : vector<1x16xf32> to vector<16x16xf32>
    %209 = arith.addf %206, %208 : vector<16x16xf32>
    %210 = vector.shape_cast %209 : vector<16x16xf32> to vector<2x8x16xf32>
    %c768 = arith.constant 768 : index
    %c0_86 = arith.constant 0 : index
    %211 = vector.load %arg0[%c768, %c0_86] : memref<1112x64xf32, #tpu.memory_space<vmem>>, vector<32x16xf32>
    %cst_87 = arith.constant dense<0.000000e+00> : vector<16x16xf32>
    %212 = tpu.matmul %198, %211, %cst_87 {dimension_numbers = #tpu.dot_dimension_numbers<[1], [0], [0], [1], [0, 0, 1, 1], [], []>} : vector<16x32xf32>, vector<32x16xf32>, vector<16x16xf32> -> vector<16x16xf32>
    %c800 = arith.constant 800 : index
    %c0_88 = arith.constant 0 : index
    %213 = vector.load %arg0[%c800, %c0_88] : memref<1112x64xf32, #tpu.memory_space<vmem>>, vector<1x16xf32>
    %214 = vector.broadcast %213 : vector<1x16xf32> to vector<16x16xf32>
    %215 = arith.addf %212, %214 : vector<16x16xf32>
    %216 = vector.shape_cast %215 : vector<16x16xf32> to vector<2x8x16xf32>
    "tpu.trace_start"() <{level = 10 : i32, message = "nqd,nkd->nqk"}> : () -> ()
    %cst_89 = arith.constant dense<0.000000e+00> : vector<2x8x8xf32>
    %217 = tpu.matmul %204, %210, %cst_89 {dimension_numbers = #tpu.dot_dimension_numbers<[2], [2], [1], [1], [0, 0, 0, 1, 1, 1], [0], [0]>} : vector<2x8x16xf32>, vector<2x8x16xf32>, vector<2x8x8xf32> -> vector<2x8x8xf32>
    "tpu.trace_stop"() : () -> ()
    %cst_90 = arith.constant 2.500000e-01 : f32
    %218 = vector.broadcast %cst_90 : f32 to vector<2x8x8xf32>
    %219 = arith.mulf %217, %218 : vector<2x8x8xf32>
    %cst_91 = arith.constant dense<0xFF800000> : vector<2x8xf32>
    %220 = vector.multi_reduction <maximumf>, %219, %cst_91 [2] : vector<2x8x8xf32> to vector<2x8xf32>
    %221 = vector.shape_cast %220 : vector<2x8xf32> to vector<2x8x1xf32>
    %222 = vector.broadcast %221 : vector<2x8x1xf32> to vector<2x8x8xf32>
    %223 = arith.subf %219, %222 : vector<2x8x8xf32>
    %224 = math.exp %223 : vector<2x8x8xf32>
    %cst_92 = arith.constant dense<0.000000e+00> : vector<2x8xf32>
    %225 = vector.multi_reduction <add>, %224, %cst_92 [2] : vector<2x8x8xf32> to vector<2x8xf32>
    %226 = vector.shape_cast %225 : vector<2x8xf32> to vector<2x8x1xf32>
    %227 = vector.broadcast %226 : vector<2x8x1xf32> to vector<2x8x8xf32>
    %228 = arith.divf %224, %227 : vector<2x8x8xf32>
    "tpu.trace_start"() <{level = 10 : i32, message = "nqk,nkd->nqd"}> : () -> ()
    %cst_93 = arith.constant dense<0.000000e+00> : vector<2x8x16xf32>
    %229 = tpu.matmul %228, %216, %cst_93 {dimension_numbers = #tpu.dot_dimension_numbers<[2], [1], [1], [2], [0, 0, 0, 1, 1, 2], [0], [0]>} : vector<2x8x8xf32>, vector<2x8x16xf32>, vector<2x8x16xf32> -> vector<2x8x16xf32>
    "tpu.trace_stop"() : () -> ()
    %230 = vector.shape_cast %229 : vector<2x8x16xf32> to vector<16x16xf32>
    %c808 = arith.constant 808 : index
    %c0_94 = arith.constant 0 : index
    %231 = vector.load %arg0[%c808, %c0_94] : memref<1112x64xf32, #tpu.memory_space<vmem>>, vector<16x32xf32>
    %cst_95 = arith.constant dense<0.000000e+00> : vector<16x32xf32>
    %232 = tpu.matmul %230, %231, %cst_95 {dimension_numbers = #tpu.dot_dimension_numbers<[1], [0], [0], [1], [0, 0, 1, 1], [], []>} : vector<16x16xf32>, vector<16x32xf32>, vector<16x32xf32> -> vector<16x32xf32>
    %c824 = arith.constant 824 : index
    %c0_96 = arith.constant 0 : index
    %233 = vector.load %arg0[%c824, %c0_96] : memref<1112x64xf32, #tpu.memory_space<vmem>>, vector<32x16xf32>
    %cst_97 = arith.constant dense<0.000000e+00> : vector<16x16xf32>
    %234 = tpu.matmul %198, %233, %cst_97 {dimension_numbers = #tpu.dot_dimension_numbers<[1], [0], [0], [1], [0, 0, 1, 1], [], []>} : vector<16x32xf32>, vector<32x16xf32>, vector<16x16xf32> -> vector<16x16xf32>
    %c856 = arith.constant 856 : index
    %c0_98 = arith.constant 0 : index
    %235 = vector.load %arg0[%c856, %c0_98] : memref<1112x64xf32, #tpu.memory_space<vmem>>, vector<1x16xf32>
    %236 = vector.broadcast %235 : vector<1x16xf32> to vector<16x16xf32>
    %237 = arith.addf %234, %236 : vector<16x16xf32>
    %238 = vector.shape_cast %237 : vector<16x16xf32> to vector<2x8x16xf32>
    %c864 = arith.constant 864 : index
    %c0_99 = arith.constant 0 : index
    %239 = vector.load %arg0[%c864, %c0_99] : memref<1112x64xf32, #tpu.memory_space<vmem>>, vector<32x16xf32>
    %cst_100 = arith.constant dense<0.000000e+00> : vector<16x16xf32>
    %240 = tpu.matmul %198, %239, %cst_100 {dimension_numbers = #tpu.dot_dimension_numbers<[1], [0], [0], [1], [0, 0, 1, 1], [], []>} : vector<16x32xf32>, vector<32x16xf32>, vector<16x16xf32> -> vector<16x16xf32>
    %c896 = arith.constant 896 : index
    %c0_101 = arith.constant 0 : index
    %241 = vector.load %arg0[%c896, %c0_101] : memref<1112x64xf32, #tpu.memory_space<vmem>>, vector<1x16xf32>
    %242 = vector.broadcast %241 : vector<1x16xf32> to vector<16x16xf32>
    %243 = arith.addf %240, %242 : vector<16x16xf32>
    %244 = vector.shape_cast %243 : vector<16x16xf32> to vector<2x8x16xf32>
    %c904 = arith.constant 904 : index
    %c0_102 = arith.constant 0 : index
    %245 = vector.load %arg0[%c904, %c0_102] : memref<1112x64xf32, #tpu.memory_space<vmem>>, vector<32x16xf32>
    %cst_103 = arith.constant dense<0.000000e+00> : vector<16x16xf32>
    %246 = tpu.matmul %198, %245, %cst_103 {dimension_numbers = #tpu.dot_dimension_numbers<[1], [0], [0], [1], [0, 0, 1, 1], [], []>} : vector<16x32xf32>, vector<32x16xf32>, vector<16x16xf32> -> vector<16x16xf32>
    %c936 = arith.constant 936 : index
    %c0_104 = arith.constant 0 : index
    %247 = vector.load %arg0[%c936, %c0_104] : memref<1112x64xf32, #tpu.memory_space<vmem>>, vector<1x16xf32>
    %248 = vector.broadcast %247 : vector<1x16xf32> to vector<16x16xf32>
    %249 = arith.addf %246, %248 : vector<16x16xf32>
    %250 = vector.shape_cast %249 : vector<16x16xf32> to vector<2x8x16xf32>
    "tpu.trace_start"() <{level = 10 : i32, message = "nqd,nkd->nqk"}> : () -> ()
    %cst_105 = arith.constant dense<0.000000e+00> : vector<2x8x8xf32>
    %251 = tpu.matmul %238, %244, %cst_105 {dimension_numbers = #tpu.dot_dimension_numbers<[2], [2], [1], [1], [0, 0, 0, 1, 1, 1], [0], [0]>} : vector<2x8x16xf32>, vector<2x8x16xf32>, vector<2x8x8xf32> -> vector<2x8x8xf32>
    "tpu.trace_stop"() : () -> ()
    %cst_106 = arith.constant 2.500000e-01 : f32
    %252 = vector.broadcast %cst_106 : f32 to vector<2x8x8xf32>
    %253 = arith.mulf %251, %252 : vector<2x8x8xf32>
    %cst_107 = arith.constant dense<0xFF800000> : vector<2x8xf32>
    %254 = vector.multi_reduction <maximumf>, %253, %cst_107 [2] : vector<2x8x8xf32> to vector<2x8xf32>
    %255 = vector.shape_cast %254 : vector<2x8xf32> to vector<2x8x1xf32>
    %256 = vector.broadcast %255 : vector<2x8x1xf32> to vector<2x8x8xf32>
    %257 = arith.subf %253, %256 : vector<2x8x8xf32>
    %258 = math.exp %257 : vector<2x8x8xf32>
    %cst_108 = arith.constant dense<0.000000e+00> : vector<2x8xf32>
    %259 = vector.multi_reduction <add>, %258, %cst_108 [2] : vector<2x8x8xf32> to vector<2x8xf32>
    %260 = vector.shape_cast %259 : vector<2x8xf32> to vector<2x8x1xf32>
    %261 = vector.broadcast %260 : vector<2x8x1xf32> to vector<2x8x8xf32>
    %262 = arith.divf %258, %261 : vector<2x8x8xf32>
    "tpu.trace_start"() <{level = 10 : i32, message = "nqk,nkd->nqd"}> : () -> ()
    %cst_109 = arith.constant dense<0.000000e+00> : vector<2x8x16xf32>
    %263 = tpu.matmul %262, %250, %cst_109 {dimension_numbers = #tpu.dot_dimension_numbers<[2], [1], [1], [2], [0, 0, 0, 1, 1, 2], [0], [0]>} : vector<2x8x8xf32>, vector<2x8x16xf32>, vector<2x8x16xf32> -> vector<2x8x16xf32>
    "tpu.trace_stop"() : () -> ()
    %264 = vector.shape_cast %263 : vector<2x8x16xf32> to vector<16x16xf32>
    %c944 = arith.constant 944 : index
    %c0_110 = arith.constant 0 : index
    %265 = vector.load %arg0[%c944, %c0_110] : memref<1112x64xf32, #tpu.memory_space<vmem>>, vector<16x32xf32>
    %cst_111 = arith.constant dense<0.000000e+00> : vector<16x32xf32>
    %266 = tpu.matmul %264, %265, %cst_111 {dimension_numbers = #tpu.dot_dimension_numbers<[1], [0], [0], [1], [0, 0, 1, 1], [], []>} : vector<16x16xf32>, vector<16x32xf32>, vector<16x32xf32> -> vector<16x32xf32>
    %267 = arith.addf %232, %266 : vector<16x32xf32>
    %c960 = arith.constant 960 : index
    %c0_112 = arith.constant 0 : index
    %268 = vector.load %arg0[%c960, %c0_112] : memref<1112x64xf32, #tpu.memory_space<vmem>>, vector<1x32xf32>
    %269 = vector.broadcast %268 : vector<1x32xf32> to vector<16x32xf32>
    %270 = arith.addf %267, %269 : vector<16x32xf32>
    %271 = arith.addf %270, %198 : vector<16x32xf32>
    %c968 = arith.constant 968 : index
    %c0_113 = arith.constant 0 : index
    %272 = vector.load %arg0[%c968, %c0_113] : memref<1112x64xf32, #tpu.memory_space<vmem>>, vector<1x32xf32>
    %c976 = arith.constant 976 : index
    %c0_114 = arith.constant 0 : index
    %273 = vector.load %arg0[%c976, %c0_114] : memref<1112x64xf32, #tpu.memory_space<vmem>>, vector<1x32xf32>
    %cst_115 = arith.constant dense<0.000000e+00> : vector<16xf32>
    %274 = vector.multi_reduction <add>, %271, %cst_115 [1] : vector<16x32xf32> to vector<16xf32>
    %275 = vector.shape_cast %274 : vector<16xf32> to vector<16x1xf32>
    %cst_116 = arith.constant 3.200000e+01 : f32
    %276 = vector.broadcast %cst_116 : f32 to vector<16x1xf32>
    %277 = arith.divf %275, %276 : vector<16x1xf32>
    %278 = vector.broadcast %277 : vector<16x1xf32> to vector<16x32xf32>
    %279 = arith.subf %271, %278 : vector<16x32xf32>
    %280 = arith.mulf %279, %279 : vector<16x32xf32>
    %cst_117 = arith.constant dense<0.000000e+00> : vector<16xf32>
    %281 = vector.multi_reduction <add>, %280, %cst_117 [1] : vector<16x32xf32> to vector<16xf32>
    %282 = vector.shape_cast %281 : vector<16xf32> to vector<16x1xf32>
    %cst_118 = arith.constant 3.200000e+01 : f32
    %283 = vector.broadcast %cst_118 : f32 to vector<16x1xf32>
    %284 = arith.divf %282, %283 : vector<16x1xf32>
    %cst_119 = arith.constant 9.99999996E-13 : f32
    %285 = vector.broadcast %cst_119 : f32 to vector<16x1xf32>
    %286 = arith.addf %284, %285 : vector<16x1xf32>
    %287 = math.rsqrt %286 : vector<16x1xf32>
    %288 = vector.broadcast %287 : vector<16x1xf32> to vector<16x32xf32>
    %289 = arith.mulf %279, %288 : vector<16x32xf32>
    %290 = vector.broadcast %272 : vector<1x32xf32> to vector<16x32xf32>
    %291 = arith.mulf %289, %290 : vector<16x32xf32>
    %292 = vector.broadcast %273 : vector<1x32xf32> to vector<16x32xf32>
    %293 = arith.addf %291, %292 : vector<16x32xf32>
    %c984 = arith.constant 984 : index
    %c0_120 = arith.constant 0 : index
    %294 = vector.load %arg0[%c984, %c0_120] : memref<1112x64xf32, #tpu.memory_space<vmem>>, vector<32x64xf32>
    %cst_121 = arith.constant dense<0.000000e+00> : vector<16x64xf32>
    %295 = tpu.matmul %293, %294, %cst_121 {dimension_numbers = #tpu.dot_dimension_numbers<[1], [0], [0], [1], [0, 0, 1, 1], [], []>} : vector<16x32xf32>, vector<32x64xf32>, vector<16x64xf32> -> vector<16x64xf32>
    %c1016 = arith.constant 1016 : index
    %c0_122 = arith.constant 0 : index
    %296 = vector.load %arg0[%c1016, %c0_122] : memref<1112x64xf32, #tpu.memory_space<vmem>>, vector<1x64xf32>
    %297 = vector.broadcast %296 : vector<1x64xf32> to vector<16x64xf32>
    %298 = arith.addf %295, %297 : vector<16x64xf32>
    %cst_123 = arith.constant 5.000000e-01 : f32
    %299 = vector.broadcast %cst_123 : f32 to vector<16x64xf32>
    %300 = arith.mulf %299, %298 : vector<16x64xf32>
    %cst_124 = arith.constant 2.000000e+00 : f32
    %301 = math.sqrt %cst_124 : f32
    %302 = vector.broadcast %301 : f32 to vector<16x64xf32>
    %303 = arith.divf %298, %302 : vector<16x64xf32>
    %304 = math.erf %303 : vector<16x64xf32>
    %cst_125 = arith.constant 1.000000e+00 : f32
    %305 = vector.broadcast %cst_125 : f32 to vector<16x64xf32>
    %306 = arith.addf %305, %304 : vector<16x64xf32>
    %307 = arith.mulf %300, %306 : vector<16x64xf32>
    %c1024 = arith.constant 1024 : index
    %c0_126 = arith.constant 0 : index
    %308 = vector.load %arg0[%c1024, %c0_126] : memref<1112x64xf32, #tpu.memory_space<vmem>>, vector<64x32xf32>
    %cst_127 = arith.constant dense<0.000000e+00> : vector<16x32xf32>
    %309 = tpu.matmul %307, %308, %cst_127 {dimension_numbers = #tpu.dot_dimension_numbers<[1], [0], [0], [1], [0, 0, 1, 1], [], []>} : vector<16x64xf32>, vector<64x32xf32>, vector<16x32xf32> -> vector<16x32xf32>
    %c1088 = arith.constant 1088 : index
    %c0_128 = arith.constant 0 : index
    %310 = vector.load %arg0[%c1088, %c0_128] : memref<1112x64xf32, #tpu.memory_space<vmem>>, vector<1x32xf32>
    %311 = vector.broadcast %310 : vector<1x32xf32> to vector<16x32xf32>
    %312 = arith.addf %309, %311 : vector<16x32xf32>
    %313 = arith.addf %312, %293 : vector<16x32xf32>
    %c1096 = arith.constant 1096 : index
    %c0_129 = arith.constant 0 : index
    %314 = vector.load %arg0[%c1096, %c0_129] : memref<1112x64xf32, #tpu.memory_space<vmem>>, vector<1x32xf32>
    %c1104 = arith.constant 1104 : index
    %c0_130 = arith.constant 0 : index
    %315 = vector.load %arg0[%c1104, %c0_130] : memref<1112x64xf32, #tpu.memory_space<vmem>>, vector<1x32xf32>
    %cst_131 = arith.constant dense<0.000000e+00> : vector<16xf32>
    %316 = vector.multi_reduction <add>, %313, %cst_131 [1] : vector<16x32xf32> to vector<16xf32>
    %317 = vector.shape_cast %316 : vector<16xf32> to vector<16x1xf32>
    %cst_132 = arith.constant 3.200000e+01 : f32
    %318 = vector.broadcast %cst_132 : f32 to vector<16x1xf32>
    %319 = arith.divf %317, %318 : vector<16x1xf32>
    %320 = vector.broadcast %319 : vector<16x1xf32> to vector<16x32xf32>
    %321 = arith.subf %313, %320 : vector<16x32xf32>
    %322 = arith.mulf %321, %321 : vector<16x32xf32>
    %cst_133 = arith.constant dense<0.000000e+00> : vector<16xf32>
    %323 = vector.multi_reduction <add>, %322, %cst_133 [1] : vector<16x32xf32> to vector<16xf32>
    %324 = vector.shape_cast %323 : vector<16xf32> to vector<16x1xf32>
    %cst_134 = arith.constant 3.200000e+01 : f32
    %325 = vector.broadcast %cst_134 : f32 to vector<16x1xf32>
    %326 = arith.divf %324, %325 : vector<16x1xf32>
    %cst_135 = arith.constant 9.99999996E-13 : f32
    %327 = vector.broadcast %cst_135 : f32 to vector<16x1xf32>
    %328 = arith.addf %326, %327 : vector<16x1xf32>
    %329 = math.rsqrt %328 : vector<16x1xf32>
    %330 = vector.broadcast %329 : vector<16x1xf32> to vector<16x32xf32>
    %331 = arith.mulf %321, %330 : vector<16x32xf32>
    %332 = vector.broadcast %314 : vector<1x32xf32> to vector<16x32xf32>
    %333 = arith.mulf %331, %332 : vector<16x32xf32>
    %334 = vector.broadcast %315 : vector<1x32xf32> to vector<16x32xf32>
    %335 = arith.addf %333, %334 : vector<16x32xf32>
    %c176 = arith.constant 176 : index
    %c0_136 = arith.constant 0 : index
    %336 = vector.load %arg0[%c176, %c0_136] : memref<1112x64xf32, #tpu.memory_space<vmem>>, vector<32x32xf32>
    %cst_137 = arith.constant dense<0.000000e+00> : vector<16x32xf32>
    %337 = tpu.matmul %335, %336, %cst_137 {dimension_numbers = #tpu.dot_dimension_numbers<[1], [0], [0], [1], [0, 0, 1, 1], [], []>} : vector<16x32xf32>, vector<32x32xf32>, vector<16x32xf32> -> vector<16x32xf32>
    %c208 = arith.constant 208 : index
    %c0_138 = arith.constant 0 : index
    %338 = vector.load %arg0[%c208, %c0_138] : memref<1112x64xf32, #tpu.memory_space<vmem>>, vector<1x32xf32>
    %339 = vector.broadcast %338 : vector<1x32xf32> to vector<16x32xf32>
    %340 = arith.addf %337, %339 : vector<16x32xf32>
    %341 = math.tanh %340 : vector<16x32xf32>
    %c216 = arith.constant 216 : index
    %c0_139 = arith.constant 0 : index
    %342 = vector.load %arg0[%c216, %c0_139] : memref<1112x64xf32, #tpu.memory_space<vmem>>, vector<32x16xf32>
    %cst_140 = arith.constant dense<0.000000e+00> : vector<16x16xf32>
    %343 = tpu.matmul %341, %342, %cst_140 {dimension_numbers = #tpu.dot_dimension_numbers<[1], [0], [0], [1], [0, 0, 1, 1], [], []>} : vector<16x32xf32>, vector<32x16xf32>, vector<16x16xf32> -> vector<16x16xf32>
    %c248 = arith.constant 248 : index
    %c0_141 = arith.constant 0 : index
    %344 = vector.load %arg0[%c248, %c0_141] : memref<1112x64xf32, #tpu.memory_space<vmem>>, vector<1x16xf32>
    %345 = vector.broadcast %344 : vector<1x16xf32> to vector<16x16xf32>
    %346 = arith.addf %343, %345 : vector<16x16xf32>
    %c0_142 = arith.constant 0 : index
    %c0_143 = arith.constant 0 : index
    %347 = vector.load %arg3[%c0_142, %c0_143] : memref<16x16xf32, #tpu.memory_space<vmem>>, vector<16x16xf32>
    tpu.vector_store %arg3[%c0_142, %c0_143], %346 {strides = array<i32>} : memref<16x16xf32, #tpu.memory_space<vmem>>, vector<16x16xf32>,
    return
  }
}

</mosaic_0001>

<llo_original>
// kernel: forward.1
$region0: #{forward.1}
  #allocation0 [shape = 'u32[]', space=smem, size = 0x4, offset = 0x4, fixed_abs, tag = 'smem constant byte address 0x4 - core index']
  #allocation1 [shape = 'u32[72,128]{1,0:T(1,128)}', space=vmem, size = 0x9000, scoped, tag = 'internal scratch']
  %s0 = inlined_call_operand.vmem [shape: f32[1112,64], index: 0, kind: input, shape index: {}]
  %s1 = inlined_call_operand.vmem [shape: f32[2,16], index: 1, kind: input, shape index: {}]
  %s2 = inlined_call_operand.vmem [shape: f32[16,16], index: 2, kind: input, shape index: {}]
  %s3 = inlined_call_operand.hbm [shape: f32[16,16], index: 3, kind: output, shape index: {}]
  %s4 = sld [smem:[#allocation0]]
  $region22: #{forward.1} parent=0
    _
  %s6 = ssub.s32 1, %s4
  %s7 = scalar_select 0, %s6, %s4
  $region1: #{forward.1} parent=0
    #allocation2 [shape = 'u8[8192]{0}', space=vmem, size = 0x2000, scoped, tag = 'output window, operand 0, single buffered']
    #allocation3 [shape = 's32[1]{0}', space=sflag, size = 0x4, scoped, tag = 'scoped memory for forward.1']
    %8 = vsyncpa [#allocation3], 0
    // Predicated region
    $region2: #{forward.1} parent=1 // pred_check
      _
    $region3: #{forward.1} parent=1 // pred_check_branch
      %10 = sbr.rel (0) target = $region5
    $region4: #{forward.1} parent=1 // pred_region
      _
    $region5: #{forward.1} parent=1 // pred_fallthru
      _
    // Predicated region
    $region6: #{forward.1} parent=1 // pred_check
      _
    $region7: #{forward.1} parent=1 // pred_check_branch
      %12 = sbr.rel (0) target = $region9
    $region8: #{forward.1} parent=1 // pred_region
      _
    $region9: #{forward.1} parent=1 // pred_fallthru
      _
    // Predicated region
    $region10: #{forward.1} parent=1 // pred_check
      _
    $region11: #{forward.1} parent=1 // pred_check_branch
      %14 = sbr.rel (0) target = $region13
    $region12: #{forward.1} parent=1 // pred_region
      _
    $region13: #{forward.1} parent=1 // pred_fallthru
      _
    %v15 = vld [vmem:[%s1] sm:$0x3]
    %v16 = vld [vmem:[%s0] sm:$0xff]
    %v17 = vld [vmem:[%s0 + $0x8] sm:$0xff]
    %v18 = vld [vmem:[%s0 + $0x10] sm:$0x1]
    %v19 = vperm.slane %v18, 0
    %vm20 = vcmask 130048
    %v22 = vsel %vm20, %v15, 0
    %24 = vmatpush.msra.mxu0 0.0
    %25 = vmatpush.msra.mxu0 0.0
    %26 = vmatpush.msra.mxu0 0.0
    %27 = vmatpush.msra.mxu0 0.0
    %28 = vmatpush.msra.mxu0 0.0
    %29 = vmatpush.msra.mxu0 0.0
    %30 = vmatpush.msra.mxu0 0.0
    %31 = vmatpush.msra.mxu0 0.0
    %32 = vmatpush.msra.mxu0 0.0
    %33 = vmatpush.msra.mxu0 0.0
    %34 = vmatpush.msra.mxu0 0.0
    %35 = vmatpush.msra.mxu0 0.0
    %36 = vmatpush.msra.mxu0 0.0
    %37 = vmatpush.msra.mxu0 0.0
    %38 = vmatpush.msra.mxu0 %v17
    %39 = vmatpush.msra.mxu0 %v16
    %40 = vmatmul.f32.gmra.mxu0 %v22
    %v41 = vpop.f32.mrf.mxu0
    %v42 = vadd.f32 %v19, %v41
    %43 = vdwg.mxu0
    %v44 = vxor.u32 %v42, 2147483648
    %v45 = vmul.f32 %v44, 1.442695
    %v46 = vpow.pop %v45
    %v47 = vadd.f32 %v46, 1.0
    %v48 = vrcp.pop %v47
    %v49 = vmul.f32 %v47, %v48
    %v50 = vsub.f32 1.0, %v49
    %v51 = vmul.f32 %v48, %v50
    %v52 = vadd.f32 %v48, %v51
    %vm53 = vweird.f32 %v47
    %vm54 = vweird.f32 %v48
    %vm55 = vmor %vm53, %vm54
    %v56 = vsel %vm55, %v48, %v52
    %v57 = vand.u32 2147483647, %v47
    %vm58 = vcmp.eq.f32.partialorder %v57, 8.507059e+37
    %v59 = vand.u32 %v47, 2147483648
    %v60 = vor.u32 1.1754944e-38, %v59
    %v61 = vsel %vm58, %v60, %v56
    %v62 = vmul.f32 1.0, %v61
    %v63 = vmul.f32 %v42, %v62
    %v64 = vld [vmem:[%s0 + $0x18] sm:$0xff]
    %v65 = vld [vmem:[%s0 + $0x20] sm:$0xff]
    %v66 = vld [vmem:[%s0 + $0x28] sm:$0xff]
    %v67 = vld [vmem:[%s0 + $0x30] sm:$0xff]
    %v68 = vld [vmem:[%s0 + $0x38] sm:$0xff]
    %v69 = vld [vmem:[%s0 + $0x40] sm:$0xff]
    %v70 = vld [vmem:[%s0 + $0x48] sm:$0xff]
    %v71 = vld [vmem:[%s0 + $0x50] sm:$0xff]
    %v72 = vld [vmem:[%s0 + $0x58] sm:$0x1]
    %v73 = vperm.slane %v72, 0
    %vm74 = vcmask 523264
    %v76 = vsel %vm74, %v63, 0
    %78 = vmatpush.msra.mxu0 0.0
    %79 = vmatpush.msra.mxu0 0.0
    %80 = vmatpush.msra.mxu0 0.0
    %81 = vmatpush.msra.mxu0 0.0
    %82 = vmatpush.msra.mxu0 0.0
    %83 = vmatpush.msra.mxu0 0.0
    %84 = vmatpush.msra.mxu0 0.0
    %85 = vmatpush.msra.mxu0 0.0
    %86 = vmatpush.msra.mxu0 %v71
    %87 = vmatpush.msra.mxu0 %v70
    %88 = vmatpush.msra.mxu0 %v69
    %89 = vmatpush.msra.mxu0 %v68
    %90 = vmatpush.msra.mxu0 %v67
    %91 = vmatpush.msra.mxu0 %v66
    %92 = vmatpush.msra.mxu0 %v65
    %93 = vmatpush.msra.mxu0 %v64
    %94 = vmatmul.f32.gmra.mxu0 %v76
    %v95 = vpop.f32.mrf.mxu0
    %v96 = vadd.f32 %v73, %v95
    %97 = vdwg.mxu0
    %v98 = vld [vmem:[%s2] sm:$0xff]
    %v99 = vld [vmem:[%s2 + $0x8] sm:$0xff]
    %v100 = vld [vmem:[%s0 + $0x60] sm:$0xff]
    %v101 = vld [vmem:[%s0 + $0x68] sm:$0xff]
    %v102 = vld [vmem:[%s0 + $0x70] sm:$0x1]
    %v103 = vperm.slane %v102, 0
    %v105 = vsel %vm20, %v98, 0
    %v108 = vsel %vm20, %v99, 0
    %110 = vmatpush.msra.mxu0 0.0
    %111 = vmatpush.msra.mxu0 0.0
    %112 = vmatpush.msra.mxu0 0.0
    %113 = vmatpush.msra.mxu0 0.0
    %114 = vmatpush.msra.mxu0 0.0
    %115 = vmatpush.msra.mxu0 0.0
    %116 = vmatpush.msra.mxu0 0.0
    %117 = vmatpush.msra.mxu0 0.0
    %118 = vmatpush.msra.mxu0 0.0
    %119 = vmatpush.msra.mxu0 0.0
    %120 = vmatpush.msra.mxu0 0.0
    %121 = vmatpush.msra.mxu0 0.0
    %122 = vmatpush.msra.mxu0 0.0
    %123 = vmatpush.msra.mxu0 0.0
    %124 = vmatpush.msra.mxu0 %v101
    %125 = vmatpush.msra.mxu0 %v100
    %126 = vmatmul.f32.gmra.mxu0 %v105
    %v127 = vpop.f32.mrf.mxu0
    %v128 = vadd.f32 %v103, %v127
    %129 = vmatmul.f32.gmra.mxu0 %v108
    %v130 = vpop.f32.mrf.mxu0
    %v131 = vadd.f32 %v103, %v130
    %132 = vdwg.mxu0
    %v133 = vtanh.pop %v128
    %v134 = vtanh.pop %v131
    %v135 = vld [vmem:[%s0 + $0x78] sm:$0xff]
    %v136 = vld [vmem:[%s0 + $0x80] sm:$0xff]
    %v137 = vld [vmem:[%s0 + $0x88] sm:$0xff]
    %v138 = vld [vmem:[%s0 + $0x90] sm:$0xff]
    %v139 = vld [vmem:[%s0 + $0x98] sm:$0x1]
    %v140 = vperm.slane %v139, 0
    %vm141 = vcmask 261120
    %v143 = vsel %vm141, %v133, 0
    %v146 = vsel %vm141, %v134, 0
    %148 = vmatpush.msra.mxu0 0.0
    %149 = vmatpush.msra.mxu0 0.0
    %150 = vmatpush.msra.mxu0 0.0
    %151 = vmatpush.msra.mxu0 0.0
    %152 = vmatpush.msra.mxu0 0.0
    %153 = vmatpush.msra.mxu0 0.0
    %154 = vmatpush.msra.mxu0 0.0
    %155 = vmatpush.msra.mxu0 0.0
    %156 = vmatpush.msra.mxu0 0.0
    %157 = vmatpush.msra.mxu0 0.0
    %158 = vmatpush.msra.mxu0 0.0
    %159 = vmatpush.msra.mxu0 0.0
    %160 = vmatpush.msra.mxu0 %v138
    %161 = vmatpush.msra.mxu0 %v137
    %162 = vmatpush.msra.mxu0 %v136
    %163 = vmatpush.msra.mxu0 %v135
    %164 = vmatmul.f32.gmra.mxu0 %v143
    %v165 = vpop.f32.mrf.mxu0
    %v166 = vadd.f32 %v140, %v165
    %167 = vmatmul.f32.gmra.mxu0 %v146
    %v168 = vpop.f32.mrf.mxu0
    %v169 = vadd.f32 %v140, %v168
    %170 = vdwg.mxu0
    %v171 = vld [vmem:[%s0 + $0x100] sm:$0xff]
    %v172 = vadd.f32 %v166, %v171
    %v173 = vadd.f32 %v169, %v171
    %v175 = vrot.slane %v96, 1
    %v176 = vperm.slane %v96, 0
    %v177 = vperm.slane %v175, 0
    %v180 = vadd.f32 %v172, %v176
    %v181 = vadd.f32 %v173, %v177
    %v182 = vld [vmem:[%s0 + $0xa0] sm:$0x1]
    %v183 = vld [vmem:[%s0 + $0xa8] sm:$0x1]
    %v184 = vsel %vm141, %v180, 0.0
    %185 = vadd.xlane.f32.xlu0 %v184
    %v186 = vpop.xlane.xlu0 %185
    %v187 = vsel %vm141, %v181, 0.0
    %188 = vadd.xlane.f32.xlu0 %v187
    %v189 = vpop.xlane.xlu0 %188
    %v190 = vrcp.pop 32.0
    %v191 = vmul.f32 32.0, %v190
    %v192 = vsub.f32 1.0, %v191
    %v193 = vmul.f32 %v190, %v192
    %v194 = vadd.f32 %v190, %v193
    %vm195 = vweird.f32 %v190
    %v196 = vsel %vm195, %v190, %v194
    %v197 = vmul.f32 %v186, %v196
    %v198 = vmul.f32 %v189, %v196
    %v199 = vsub.f32 %v180, %v197
    %v200 = vsub.f32 %v181, %v198
    %v201 = vmul.f32 %v199, %v199
    %v202 = vmul.f32 %v200, %v200
    %v203 = vsel %vm141, %v201, 0.0
    %204 = vadd.xlane.f32.xlu0 %v203
    %v205 = vpop.xlane.xlu0 %204
    %v206 = vsel %vm141, %v202, 0.0
    %207 = vadd.xlane.f32.xlu0 %v206
    %v208 = vpop.xlane.xlu0 %207
    %v209 = vmul.f32 %v205, %v196
    %v210 = vmul.f32 %v208, %v196
    %v211 = vadd.f32 %v209, 1e-12
    %v212 = vadd.f32 %v210, 1e-12
    %v213 = vrsqrt.pop %v211
    %v214 = vmul.f32 %v213, %v211
    %v215 = vmul.f32 %v214, %v213
    %v216 = vmul.f32 0.5, %v215
    %v217 = vsub.f32 1.5, %v216
    %v218 = vmul.f32 %v213, %v217
    %vm219 = vweird.f32 %v211
    %vm220 = vweird.f32 %v213
    %vm221 = vmor %vm219, %vm220
    %v222 = vsel %vm221, %v213, %v218
    %v223 = vrsqrt.pop %v212
    %v224 = vmul.f32 %v223, %v212
    %v225 = vmul.f32 %v224, %v223
    %v226 = vmul.f32 0.5, %v225
    %v227 = vsub.f32 1.5, %v226
    %v228 = vmul.f32 %v223, %v227
    %vm229 = vweird.f32 %v212
    %vm230 = vweird.f32 %v223
    %vm231 = vmor %vm229, %vm230
    %v232 = vsel %vm231, %v223, %v228
    %v233 = vmul.f32 %v199, %v222
    %v234 = vmul.f32 %v200, %v232
    %v235 = vperm.slane %v182, 0
    %v236 = vmul.f32 %v233, %v235
    %v237 = vmul.f32 %v234, %v235
    %v238 = vperm.slane %v183, 0
    %v239 = vadd.f32 %v236, %v238
    %v240 = vadd.f32 %v237, %v238
    %v241 = vld [vmem:[%s0 + $0x108] sm:$0xff]
    %v242 = vld [vmem:[%s0 + $0x110] sm:$0xff]
    %v243 = vld [vmem:[%s0 + $0x118] sm:$0xff]
    %v244 = vld [vmem:[%s0 + $0x120] sm:$0xff]
    %v245 = vld [vmem:[%s0 + $0x128] sm:$0x1]
    %v246 = vperm.slane %v245, 0
    %v248 = vsel %vm141, %v239, 0
    %v251 = vsel %vm141, %v240, 0
    %253 = vmatpush.msra.mxu0 0.0
    %254 = vmatpush.msra.mxu0 0.0
    %255 = vmatpush.msra.mxu0 0.0
    %256 = vmatpush.msra.mxu0 0.0
    %257 = vmatpush.msra.mxu0 0.0
    %258 = vmatpush.msra.mxu0 0.0
    %259 = vmatpush.msra.mxu0 0.0
    %260 = vmatpush.msra.mxu0 0.0
    %261 = vmatpush.msra.mxu0 0.0
    %262 = vmatpush.msra.mxu0 0.0
    %263 = vmatpush.msra.mxu0 0.0
    %264 = vmatpush.msra.mxu0 0.0
    %265 = vmatpush.msra.mxu0 %v244
    %266 = vmatpush.msra.mxu0 %v243
    %267 = vmatpush.msra.mxu0 %v242
    %268 = vmatpush.msra.mxu0 %v241
    %269 = vmatmul.f32.gmra.mxu0 %v248
    %v270 = vpop.f32.mrf.mxu0
    %v271 = vadd.f32 %v246, %v270
    %272 = vmatmul.f32.gmra.mxu0 %v251
    %v273 = vpop.f32.mrf.mxu0
    %v274 = vadd.f32 %v246, %v273
    %275 = vdwg.mxu0
    %v276 = vld [vmem:[%s0 + $0x130] sm:$0xff]
    %v277 = vld [vmem:[%s0 + $0x138] sm:$0xff]
    %v278 = vld [vmem:[%s0 + $0x140] sm:$0xff]
    %v279 = vld [vmem:[%s0 + $0x148] sm:$0xff]
    %v280 = vld [vmem:[%s0 + $0x150] sm:$0x1]
    %v281 = vperm.slane %v280, 0
    %282 = vmatpush.msra.mxu0 0.0
    %283 = vmatpush.msra.mxu0 0.0
    %284 = vmatpush.msra.mxu0 0.0
    %285 = vmatpush.msra.mxu0 0.0
    %286 = vmatpush.msra.mxu0 0.0
    %287 = vmatpush.msra.mxu0 0.0
    %288 = vmatpush.msra.mxu0 0.0
    %289 = vmatpush.msra.mxu0 0.0
    %290 = vmatpush.msra.mxu0 0.0
    %291 = vmatpush.msra.mxu0 0.0
    %292 = vmatpush.msra.mxu0 0.0
    %293 = vmatpush.msra.mxu0 0.0
    %294 = vmatpush.msra.mxu0 %v279
    %295 = vmatpush.msra.mxu0 %v278
    %296 = vmatpush.msra.mxu0 %v277
    %297 = vmatpush.msra.mxu0 %v276
    %298 = vmatmul.f32.gmra.mxu0 %v248
    %v299 = vpop.f32.mrf.mxu0
    %v300 = vadd.f32 %v281, %v299
    %301 = vmatmul.f32.gmra.mxu0 %v251
    %v302 = vpop.f32.mrf.mxu0
    %v303 = vadd.f32 %v281, %v302
    %304 = vdwg.mxu0
    %v305 = vld [vmem:[%s0 + $0x158] sm:$0xff]
    %v306 = vld [vmem:[%s0 + $0x160] sm:$0xff]
    %v307 = vld [vmem:[%s0 + $0x168] sm:$0xff]
    %v308 = vld [vmem:[%s0 + $0x170] sm:$0xff]
    %v309 = vld [vmem:[%s0 + $0x178] sm:$0x1]
    %v310 = vperm.slane %v309, 0
    %311 = vmatpush.msra.mxu0 0.0
    %312 = vmatpush.msra.mxu0 0.0
    %313 = vmatpush.msra.mxu0 0.0
    %314 = vmatpush.msra.mxu0 0.0
    %315 = vmatpush.msra.mxu0 0.0
    %316 = vmatpush.msra.mxu0 0.0
    %317 = vmatpush.msra.mxu0 0.0
    %318 = vmatpush.msra.mxu0 0.0
    %319 = vmatpush.msra.mxu0 0.0
    %320 = vmatpush.msra.mxu0 0.0
    %321 = vmatpush.msra.mxu0 0.0
    %322 = vmatpush.msra.mxu0 0.0
    %323 = vmatpush.msra.mxu0 %v308
    %324 = vmatpush.msra.mxu0 %v307
    %325 = vmatpush.msra.mxu0 %v306
    %326 = vmatpush.msra.mxu0 %v305
    %327 = vmatmul.f32.gmra.mxu0 %v248
    %v328 = vpop.f32.mrf.mxu0
    %v329 = vadd.f32 %v310, %v328
    %330 = vmatmul.f32.gmra.mxu0 %v251
    %v331 = vpop.f32.mrf.mxu0
    %v332 = vadd.f32 %v310, %v331
    %333 = vdwg.mxu0
    %v335 = vsel %vm20, %v271, 0
    %v338 = vsel %vm20, %v300, 0
    %340 = vmatpush.xpose.msra.mxu0 0.0
    %341 = vmatpush.xpose.msra.mxu0 0.0
    %342 = vmatpush.xpose.msra.mxu0 0.0
    %343 = vmatpush.xpose.msra.mxu0 0.0
    %344 = vmatpush.xpose.msra.mxu0 0.0
    %345 = vmatpush.xpose.msra.mxu0 0.0
    %346 = vmatpush.xpose.msra.mxu0 0.0
    %347 = vmatpush.xpose.msra.mxu0 0.0
    %348 = vmatpush.xpose.msra.mxu0 0.0
    %349 = vmatpush.xpose.msra.mxu0 0.0
    %350 = vmatpush.xpose.msra.mxu0 0.0
    %351 = vmatpush.xpose.msra.mxu0 0.0
    %352 = vmatpush.xpose.msra.mxu0 0.0
    %353 = vmatpush.xpose.msra.mxu0 0.0
    %354 = vmatpush.xpose.msra.mxu0 0.0
    %355 = vmatpush.xpose.msra.mxu0 %v338
    %356 = vmatmul.f32.gmra.mxu0 %v335
    %v357 = vpop.f32.mrf.mxu0
    %v358 = vadd.f32 0.0, %v357
    %359 = vdwg.mxu0
    %v361 = vsel %vm20, %v274, 0
    %v364 = vsel %vm20, %v303, 0
    %366 = vmatpush.xpose.msra.mxu0 0.0
    %367 = vmatpush.xpose.msra.mxu0 0.0
    %368 = vmatpush.xpose.msra.mxu0 0.0
    %369 = vmatpush.xpose.msra.mxu0 0.0
    %370 = vmatpush.xpose.msra.mxu0 0.0
    %371 = vmatpush.xpose.msra.mxu0 0.0
    %372 = vmatpush.xpose.msra.mxu0 0.0
    %373 = vmatpush.xpose.msra.mxu0 0.0
    %374 = vmatpush.xpose.msra.mxu0 0.0
    %375 = vmatpush.xpose.msra.mxu0 0.0
    %376 = vmatpush.xpose.msra.mxu0 0.0
    %377 = vmatpush.xpose.msra.mxu0 0.0
    %378 = vmatpush.xpose.msra.mxu0 0.0
    %379 = vmatpush.xpose.msra.mxu0 0.0
    %380 = vmatpush.xpose.msra.mxu0 0.0
    %381 = vmatpush.xpose.msra.mxu0 %v364
    %382 = vmatmul.f32.gmra.mxu0 %v361
    %v383 = vpop.f32.mrf.mxu0
    %v384 = vadd.f32 0.0, %v383
    %385 = vdwg.mxu0
    %v386 = vmul.f32 %v358, 0.25
    %v387 = vmul.f32 %v384, 0.25
    %vm388 = vcmask 64512
    %v389 = vsel %vm388, %v386, -inf
    %390 = vmax.xlane.f32.xlu0 %v389
    %v391 = vpop.xlane.xlu0 %390
    %v392 = vsel %vm388, %v387, -inf
    %393 = vmax.xlane.f32.xlu0 %v392
    %v394 = vpop.xlane.xlu0 %393
    %v395 = vsub.f32 %v386, %v391
    %v396 = vsub.f32 %v387, %v394
    %v397 = vmul.f32 %v395, 1.442695
    %v398 = vpow.pop %v397
    %v399 = vmul.f32 %v396, 1.442695
    %v400 = vpow.pop %v399
    %v401 = vsel %vm388, %v398, 0.0
    %402 = vadd.xlane.f32.xlu0 %v401
    %v403 = vpop.xlane.xlu0 %402
    %v404 = vsel %vm388, %v400, 0.0
    %405 = vadd.xlane.f32.xlu0 %v404
    %v406 = vpop.xlane.xlu0 %405
    %v407 = vrcp.pop %v403
    %v408 = vmul.f32 %v403, %v407
    %v409 = vsub.f32 1.0, %v408
    %v410 = vmul.f32 %v407, %v409
    %v411 = vadd.f32 %v407, %v410
    %vm412 = vweird.f32 %v403
    %vm413 = vweird.f32 %v407
    %vm414 = vmor %vm412, %vm413
    %v415 = vsel %vm414, %v407, %v411
    %v416 = vand.u32 2147483647, %v403
    %vm417 = vcmp.eq.f32.partialorder %v416, 8.507059e+37
    %v418 = vand.u32 %v403, 2147483648
    %v419 = vor.u32 1.1754944e-38, %v418
    %v420 = vsel %vm417, %v419, %v415
    %v421 = vmul.f32 %v398, %v420
    %v422 = vrcp.pop %v406
    %v423 = vmul.f32 %v406, %v422
    %v424 = vsub.f32 1.0, %v423
    %v425 = vmul.f32 %v422, %v424
    %v426 = vadd.f32 %v422, %v425
    %vm427 = vweird.f32 %v406
    %vm428 = vweird.f32 %v422
    %vm429 = vmor %vm427, %vm428
    %v430 = vsel %vm429, %v422, %v426
    %v431 = vand.u32 2147483647, %v406
    %vm432 = vcmp.eq.f32.partialorder %v431, 8.507059e+37
    %v433 = vand.u32 %v406, 2147483648
    %v434 = vor.u32 1.1754944e-38, %v433
    %v435 = vsel %vm432, %v434, %v430
    %v436 = vmul.f32 %v400, %v435
    %v438 = vsel %vm388, %v421, 0
    %440 = vmatpush.msra.mxu0 0.0
    %441 = vmatpush.msra.mxu0 0.0
    %442 = vmatpush.msra.mxu0 0.0
    %443 = vmatpush.msra.mxu0 0.0
    %444 = vmatpush.msra.mxu0 0.0
    %445 = vmatpush.msra.mxu0 0.0
    %446 = vmatpush.msra.mxu0 0.0
    %447 = vmatpush.msra.mxu0 0.0
    %448 = vmatpush.msra.mxu0 0.0
    %449 = vmatpush.msra.mxu0 0.0
    %450 = vmatpush.msra.mxu0 0.0
    %451 = vmatpush.msra.mxu0 0.0
    %452 = vmatpush.msra.mxu0 0.0
    %453 = vmatpush.msra.mxu0 0.0
    %454 = vmatpush.msra.mxu0 0.0
    %455 = vmatpush.msra.mxu0 %v329
    %456 = vmatmul.f32.gmra.mxu0 %v438
    %v457 = vpop.f32.mrf.mxu0
    %v458 = vadd.f32 0.0, %v457
    %459 = vdwg.mxu0
    %v461 = vsel %vm388, %v436, 0
    %463 = vmatpush.msra.mxu0 0.0
    %464 = vmatpush.msra.mxu0 0.0
    %465 = vmatpush.msra.mxu0 0.0
    %466 = vmatpush.msra.mxu0 0.0
    %467 = vmatpush.msra.mxu0 0.0
    %468 = vmatpush.msra.mxu0 0.0
    %469 = vmatpush.msra.mxu0 0.0
    %470 = vmatpush.msra.mxu0 0.0
    %471 = vmatpush.msra.mxu0 0.0
    %472 = vmatpush.msra.mxu0 0.0
    %473 = vmatpush.msra.mxu0 0.0
    %474 = vmatpush.msra.mxu0 0.0
    %475 = vmatpush.msra.mxu0 0.0
    %476 = vmatpush.msra.mxu0 0.0
    %477 = vmatpush.msra.mxu0 0.0
    %478 = vmatpush.msra.mxu0 %v332
    %479 = vmatmul.f32.gmra.mxu0 %v461
    %v480 = vpop.f32.mrf.mxu0
    %v481 = vadd.f32 0.0, %v480
    %482 = vdwg.mxu0
    %v483 = vld [vmem:[%s0 + $0x180] sm:$0xff]
    %v484 = vld [vmem:[%s0 + $0x188] sm:$0xff]
    %v485 = vld [vmem:[%s0 + $0x190] sm:$0xff]
    %v486 = vld [vmem:[%s0 + $0x198] sm:$0xff]
    %v487 = vld [vmem:[%s0 + $0x1a0] sm:$0xff]
    %v488 = vld [vmem:[%s0 + $0x1a8] sm:$0xff]
    %v489 = vld [vmem:[%s0 + $0x1b0] sm:$0x1]
    %v490 = vperm.slane %v489, 0
    %491 = vmatpush.msra.mxu0 0.0
    %492 = vmatpush.msra.mxu0 0.0
    %493 = vmatpush.msra.mxu0 0.0
    %494 = vmatpush.msra.mxu0 0.0
    %495 = vmatpush.msra.mxu0 0.0
    %496 = vmatpush.msra.mxu0 0.0
    %497 = vmatpush.msra.mxu0 0.0
    %498 = vmatpush.msra.mxu0 0.0
    %499 = vmatpush.msra.mxu0 0.0
    %500 = vmatpush.msra.mxu0 0.0
    %501 = vmatpush.msra.mxu0 0.0
    %502 = vmatpush.msra.mxu0 0.0
    %503 = vmatpush.msra.mxu0 %v488
    %504 = vmatpush.msra.mxu0 %v487
    %505 = vmatpush.msra.mxu0 %v486
    %506 = vmatpush.msra.mxu0 %v485
    %507 = vmatmul.f32.gmra.mxu0 %v248
    %v508 = vpop.f32.mrf.mxu0
    %v509 = vadd.f32 %v490, %v508
    %510 = vmatmul.f32.gmra.mxu0 %v251
    %v511 = vpop.f32.mrf.mxu0
    %v512 = vadd.f32 %v490, %v511
    %513 = vdwg.mxu0
    %v514 = vld [vmem:[%s0 + $0x1b8] sm:$0xff]
    %v515 = vld [vmem:[%s0 + $0x1c0] sm:$0xff]
    %v516 = vld [vmem:[%s0 + $0x1c8] sm:$0xff]
    %v517 = vld [vmem:[%s0 + $0x1d0] sm:$0xff]
    %v518 = vld [vmem:[%s0 + $0x1d8] sm:$0x1]
    %v519 = vperm.slane %v518, 0
    %520 = vmatpush.msra.mxu0 0.0
    %521 = vmatpush.msra.mxu0 0.0
    %522 = vmatpush.msra.mxu0 0.0
    %523 = vmatpush.msra.mxu0 0.0
    %524 = vmatpush.msra.mxu0 0.0
    %525 = vmatpush.msra.mxu0 0.0
    %526 = vmatpush.msra.mxu0 0.0
    %527 = vmatpush.msra.mxu0 0.0
    %528 = vmatpush.msra.mxu0 0.0
    %529 = vmatpush.msra.mxu0 0.0
    %530 = vmatpush.msra.mxu0 0.0
    %531 = vmatpush.msra.mxu0 0.0
    %532 = vmatpush.msra.mxu0 %v517
    %533 = vmatpush.msra.mxu0 %v516
    %534 = vmatpush.msra.mxu0 %v515
    %535 = vmatpush.msra.mxu0 %v514
    %536 = vmatmul.f32.gmra.mxu0 %v248
    %v537 = vpop.f32.mrf.mxu0
    %v538 = vadd.f32 %v519, %v537
    %539 = vmatmul.f32.gmra.mxu0 %v251
    %v540 = vpop.f32.mrf.mxu0
    %v541 = vadd.f32 %v519, %v540
    %542 = vdwg.mxu0
    %v543 = vld [vmem:[%s0 + $0x1e0] sm:$0xff]
    %v544 = vld [vmem:[%s0 + $0x1e8] sm:$0xff]
    %v545 = vld [vmem:[%s0 + $0x1f0] sm:$0xff]
    %v546 = vld [vmem:[%s0 + $0x1f8] sm:$0xff]
    %v547 = vld [vmem:[%s0 + $0x200] sm:$0x1]
    %v548 = vperm.slane %v547, 0
    %549 = vmatpush.msra.mxu0 0.0
    %550 = vmatpush.msra.mxu0 0.0
    %551 = vmatpush.msra.mxu0 0.0
    %552 = vmatpush.msra.mxu0 0.0
    %553 = vmatpush.msra.mxu0 0.0
    %554 = vmatpush.msra.mxu0 0.0
    %555 = vmatpush.msra.mxu0 0.0
    %556 = vmatpush.msra.mxu0 0.0
    %557 = vmatpush.msra.mxu0 0.0
    %558 = vmatpush.msra.mxu0 0.0
    %559 = vmatpush.msra.mxu0 0.0
    %560 = vmatpush.msra.mxu0 0.0
    %561 = vmatpush.msra.mxu0 %v546
    %562 = vmatpush.msra.mxu0 %v545
    %563 = vmatpush.msra.mxu0 %v544
    %564 = vmatpush.msra.mxu0 %v543
    %565 = vmatmul.f32.gmra.mxu0 %v248
    %v566 = vpop.f32.mrf.mxu0
    %v567 = vadd.f32 %v548, %v566
    %568 = vmatmul.f32.gmra.mxu0 %v251
    %v569 = vpop.f32.mrf.mxu0
    %v570 = vadd.f32 %v548, %v569
    %571 = vdwg.mxu0
    %v573 = vsel %vm20, %v509, 0
    %v576 = vsel %vm20, %v538, 0
    %578 = vmatpush.xpose.msra.mxu0 0.0
    %579 = vmatpush.xpose.msra.mxu0 0.0
    %580 = vmatpush.xpose.msra.mxu0 0.0
    %581 = vmatpush.xpose.msra.mxu0 0.0
    %582 = vmatpush.xpose.msra.mxu0 0.0
    %583 = vmatpush.xpose.msra.mxu0 0.0
    %584 = vmatpush.xpose.msra.mxu0 0.0
    %585 = vmatpush.xpose.msra.mxu0 0.0
    %586 = vmatpush.xpose.msra.mxu0 0.0
    %587 = vmatpush.xpose.msra.mxu0 0.0
    %588 = vmatpush.xpose.msra.mxu0 0.0
    %589 = vmatpush.xpose.msra.mxu0 0.0
    %590 = vmatpush.xpose.msra.mxu0 0.0
    %591 = vmatpush.xpose.msra.mxu0 0.0
    %592 = vmatpush.xpose.msra.mxu0 0.0
    %593 = vmatpush.xpose.msra.mxu0 %v576
    %594 = vmatmul.f32.gmra.mxu0 %v573
    %v595 = vpop.f32.mrf.mxu0
    %v596 = vadd.f32 0.0, %v595
    %597 = vdwg.mxu0
    %v599 = vsel %vm20, %v512, 0
    %v602 = vsel %vm20, %v541, 0
    %604 = vmatpush.xpose.msra.mxu0 0.0
    %605 = vmatpush.xpose.msra.mxu0 0.0
    %606 = vmatpush.xpose.msra.mxu0 0.0
    %607 = vmatpush.xpose.msra.mxu0 0.0
    %608 = vmatpush.xpose.msra.mxu0 0.0
    %609 = vmatpush.xpose.msra.mxu0 0.0
    %610 = vmatpush.xpose.msra.mxu0 0.0
    %611 = vmatpush.xpose.msra.mxu0 0.0
    %612 = vmatpush.xpose.msra.mxu0 0.0
    %613 = vmatpush.xpose.msra.mxu0 0.0
    %614 = vmatpush.xpose.msra.mxu0 0.0
    %615 = vmatpush.xpose.msra.mxu0 0.0
    %616 = vmatpush.xpose.msra.mxu0 0.0
    %617 = vmatpush.xpose.msra.mxu0 0.0
    %618 = vmatpush.xpose.msra.mxu0 0.0
    %619 = vmatpush.xpose.msra.mxu0 %v602
    %620 = vmatmul.f32.gmra.mxu0 %v599
    %v621 = vpop.f32.mrf.mxu0
    %v622 = vadd.f32 0.0, %v621
    %623 = vdwg.mxu0
    %v624 = vmul.f32 %v596, 0.25
    %v625 = vmul.f32 %v622, 0.25
    %v626 = vsel %vm388, %v624, -inf
    %627 = vmax.xlane.f32.xlu0 %v626
    %v628 = vpop.xlane.xlu0 %627
    %v629 = vsel %vm388, %v625, -inf
    %630 = vmax.xlane.f32.xlu0 %v629
    %v631 = vpop.xlane.xlu0 %630
    %v632 = vsub.f32 %v624, %v628
    %v633 = vsub.f32 %v625, %v631
    %v634 = vmul.f32 %v632, 1.442695
    %v635 = vpow.pop %v634
    %v636 = vmul.f32 %v633, 1.442695
    %v637 = vpow.pop %v636
    %v638 = vsel %vm388, %v635, 0.0
    %639 = vadd.xlane.f32.xlu0 %v638
    %v640 = vpop.xlane.xlu0 %639
    %v641 = vsel %vm388, %v637, 0.0
    %642 = vadd.xlane.f32.xlu0 %v641
    %v643 = vpop.xlane.xlu0 %642
    %v644 = vrcp.pop %v640
    %v645 = vmul.f32 %v640, %v644
    %v646 = vsub.f32 1.0, %v645
    %v647 = vmul.f32 %v644, %v646
    %v648 = vadd.f32 %v644, %v647
    %vm649 = vweird.f32 %v640
    %vm650 = vweird.f32 %v644
    %vm651 = vmor %vm649, %vm650
    %v652 = vsel %vm651, %v644, %v648
    %v653 = vand.u32 2147483647, %v640
    %vm654 = vcmp.eq.f32.partialorder %v653, 8.507059e+37
    %v655 = vand.u32 %v640, 2147483648
    %v656 = vor.u32 1.1754944e-38, %v655
    %v657 = vsel %vm654, %v656, %v652
    %v658 = vmul.f32 %v635, %v657
    %v659 = vrcp.pop %v643
    %v660 = vmul.f32 %v643, %v659
    %v661 = vsub.f32 1.0, %v660
    %v662 = vmul.f32 %v659, %v661
    %v663 = vadd.f32 %v659, %v662
    %vm664 = vweird.f32 %v643
    %vm665 = vweird.f32 %v659
    %vm666 = vmor %vm664, %vm665
    %v667 = vsel %vm666, %v659, %v663
    %v668 = vand.u32 2147483647, %v643
    %vm669 = vcmp.eq.f32.partialorder %v668, 8.507059e+37
    %v670 = vand.u32 %v643, 2147483648
    %v671 = vor.u32 1.1754944e-38, %v670
    %v672 = vsel %vm669, %v671, %v667
    %v673 = vmul.f32 %v637, %v672
    %v675 = vsel %vm388, %v658, 0
    %677 = vmatpush.msra.mxu0 0.0
    %678 = vmatpush.msra.mxu0 0.0
    %679 = vmatpush.msra.mxu0 0.0
    %680 = vmatpush.msra.mxu0 0.0
    %681 = vmatpush.msra.mxu0 0.0
    %682 = vmatpush.msra.mxu0 0.0
    %683 = vmatpush.msra.mxu0 0.0
    %684 = vmatpush.msra.mxu0 0.0
    %685 = vmatpush.msra.mxu0 0.0
    %686 = vmatpush.msra.mxu0 0.0
    %687 = vmatpush.msra.mxu0 0.0
    %688 = vmatpush.msra.mxu0 0.0
    %689 = vmatpush.msra.mxu0 0.0
    %690 = vmatpush.msra.mxu0 0.0
    %691 = vmatpush.msra.mxu0 0.0
    %692 = vmatpush.msra.mxu0 %v567
    %693 = vmatmul.f32.gmra.mxu0 %v675
    %v694 = vpop.f32.mrf.mxu0
    %v695 = vadd.f32 0.0, %v694
    %696 = vdwg.mxu0
    %v698 = vsel %vm388, %v673, 0
    %700 = vmatpush.msra.mxu0 0.0
    %701 = vmatpush.msra.mxu0 0.0
    %702 = vmatpush.msra.mxu0 0.0
    %703 = vmatpush.msra.mxu0 0.0
    %704 = vmatpush.msra.mxu0 0.0
    %705 = vmatpush.msra.mxu0 0.0
    %706 = vmatpush.msra.mxu0 0.0
    %707 = vmatpush.msra.mxu0 0.0
    %708 = vmatpush.msra.mxu0 0.0
    %709 = vmatpush.msra.mxu0 0.0
    %710 = vmatpush.msra.mxu0 0.0
    %711 = vmatpush.msra.mxu0 0.0
    %712 = vmatpush.msra.mxu0 0.0
    %713 = vmatpush.msra.mxu0 0.0
    %714 = vmatpush.msra.mxu0 0.0
    %715 = vmatpush.msra.mxu0 %v570
    %716 = vmatmul.f32.gmra.mxu0 %v698
    %v717 = vpop.f32.mrf.mxu0
    %v718 = vadd.f32 0.0, %v717
    %719 = vdwg.mxu0
    %v720 = vld [vmem:[%s0 + $0x208] sm:$0xff]
    %v721 = vld [vmem:[%s0 + $0x210] sm:$0xff]
    %v723 = vsel %vm20, %v695, 0
    %v726 = vsel %vm20, %v718, 0
    %728 = vmatpush.msra.mxu0 0.0
    %729 = vmatpush.msra.mxu0 0.0
    %730 = vmatpush.msra.mxu0 0.0
    %731 = vmatpush.msra.mxu0 0.0
    %732 = vmatpush.msra.mxu0 0.0
    %733 = vmatpush.msra.mxu0 0.0
    %734 = vmatpush.msra.mxu0 0.0
    %735 = vmatpush.msra.mxu0 0.0
    %736 = vmatpush.msra.mxu0 0.0
    %737 = vmatpush.msra.mxu0 0.0
    %738 = vmatpush.msra.mxu0 0.0
    %739 = vmatpush.msra.mxu0 0.0
    %740 = vmatpush.msra.mxu0 0.0
    %741 = vmatpush.msra.mxu0 0.0
    %742 = vmatpush.msra.mxu0 %v721
    %743 = vmatpush.msra.mxu0 %v720
    %744 = vmatmul.f32.gmra.mxu0 %v723
    %v745 = vpop.f32.mrf.mxu0
    %v746 = vadd.f32 0.0, %v745
    %747 = vmatmul.f32.gmra.mxu0 %v726
    %v748 = vpop.f32.mrf.mxu0
    %v749 = vadd.f32 0.0, %v748
    %750 = vdwg.mxu0
    %v752 = vsel %vm20, %v458, 0
    %v755 = vsel %vm20, %v481, 0
    %757 = vmatpush.msra.mxu0 0.0
    %758 = vmatpush.msra.mxu0 0.0
    %759 = vmatpush.msra.mxu0 0.0
    %760 = vmatpush.msra.mxu0 0.0
    %761 = vmatpush.msra.mxu0 0.0
    %762 = vmatpush.msra.mxu0 0.0
    %763 = vmatpush.msra.mxu0 0.0
    %764 = vmatpush.msra.mxu0 0.0
    %765 = vmatpush.msra.mxu0 0.0
    %766 = vmatpush.msra.mxu0 0.0
    %767 = vmatpush.msra.mxu0 0.0
    %768 = vmatpush.msra.mxu0 0.0
    %769 = vmatpush.msra.mxu0 0.0
    %770 = vmatpush.msra.mxu0 0.0
    %771 = vmatpush.msra.mxu0 %v484
    %772 = vmatpush.msra.mxu0 %v483
    %773 = vmatmul.f32.gmra.mxu0 %v752
    %v774 = vpop.f32.mrf.mxu0
    %v775 = vadd.f32 %v746, %v774
    %776 = vmatmul.f32.gmra.mxu0 %v755
    %v777 = vpop.f32.mrf.mxu0
    %v778 = vadd.f32 %v749, %v777
    %779 = vdwg.mxu0
    %v780 = vld [vmem:[%s0 + $0x218] sm:$0x1]
    %v781 = vperm.slane %v780, 0
    %v782 = vadd.f32 %v775, %v781
    %v783 = vadd.f32 %v778, %v781
    %v784 = vadd.f32 %v782, %v239
    %v785 = vadd.f32 %v783, %v240
    %v786 = vld [vmem:[%s0 + $0x220] sm:$0x1]
    %v787 = vld [vmem:[%s0 + $0x228] sm:$0x1]
    %v788 = vsel %vm141, %v784, 0.0
    %789 = vadd.xlane.f32.xlu0 %v788
    %v790 = vpop.xlane.xlu0 %789
    %v791 = vsel %vm141, %v785, 0.0
    %792 = vadd.xlane.f32.xlu0 %v791
    %v793 = vpop.xlane.xlu0 %792
    %v794 = vmul.f32 %v790, %v196
    %v795 = vmul.f32 %v793, %v196
    %v796 = vsub.f32 %v784, %v794
    %v797 = vsub.f32 %v785, %v795
    %v798 = vmul.f32 %v796, %v796
    %v799 = vmul.f32 %v797, %v797
    %v800 = vsel %vm141, %v798, 0.0
    %801 = vadd.xlane.f32.xlu0 %v800
    %v802 = vpop.xlane.xlu0 %801
    %v803 = vsel %vm141, %v799, 0.0
    %804 = vadd.xlane.f32.xlu0 %v803
    %v805 = vpop.xlane.xlu0 %804
    %v806 = vmul.f32 %v802, %v196
    %v807 = vmul.f32 %v805, %v196
    %v808 = vadd.f32 %v806, 1e-12
    %v809 = vadd.f32 %v807, 1e-12
    %v810 = vrsqrt.pop %v808
    %v811 = vmul.f32 %v810, %v808
    %v812 = vmul.f32 %v811, %v810
    %v813 = vmul.f32 0.5, %v812
    %v814 = vsub.f32 1.5, %v813
    %v815 = vmul.f32 %v810, %v814
    %vm816 = vweird.f32 %v808
    %vm817 = vweird.f32 %v810
    %vm818 = vmor %vm816, %vm817
    %v819 = vsel %vm818, %v810, %v815
    %v820 = vrsqrt.pop %v809
    %v821 = vmul.f32 %v820, %v809
    %v822 = vmul.f32 %v821, %v820
    %v823 = vmul.f32 0.5, %v822
    %v824 = vsub.f32 1.5, %v823
    %v825 = vmul.f32 %v820, %v824
    %vm826 = vweird.f32 %v809
    %vm827 = vweird.f32 %v820
    %vm828 = vmor %vm826, %vm827
    %v829 = vsel %vm828, %v820, %v825
    %v830 = vmul.f32 %v796, %v819
    %v831 = vmul.f32 %v797, %v829
    %v832 = vperm.slane %v786, 0
    %v833 = vmul.f32 %v830, %v832
    %v834 = vmul.f32 %v831, %v832
    %v835 = vperm.slane %v787, 0
    %v836 = vadd.f32 %v833, %v835
    %v837 = vadd.f32 %v834, %v835
    %v838 = vld [vmem:[%s0 + $0x230] sm:$0xff]
    %v839 = vld [vmem:[%s0 + $0x238] sm:$0xff]
    %v840 = vld [vmem:[%s0 + $0x240] sm:$0xff]
    %v841 = vld [vmem:[%s0 + $0x248] sm:$0xff]
    %v842 = vld [vmem:[%s0 + $0x250] sm:$0x1]
    %v843 = vperm.slane %v842, 0
    %v845 = vsel %vm141, %v836, 0
    %v848 = vsel %vm141, %v837, 0
    %850 = vmatpush.msra.mxu0 0.0
    %851 = vmatpush.msra.mxu0 0.0
    %852 = vmatpush.msra.mxu0 0.0
    %853 = vmatpush.msra.mxu0 0.0
    %854 = vmatpush.msra.mxu0 0.0
    %855 = vmatpush.msra.mxu0 0.0
    %856 = vmatpush.msra.mxu0 0.0
    %857 = vmatpush.msra.mxu0 0.0
    %858 = vmatpush.msra.mxu0 0.0
    %859 = vmatpush.msra.mxu0 0.0
    %860 = vmatpush.msra.mxu0 0.0
    %861 = vmatpush.msra.mxu0 0.0
    %862 = vmatpush.msra.mxu0 %v841
    %863 = vmatpush.msra.mxu0 %v840
    %864 = vmatpush.msra.mxu0 %v839
    %865 = vmatpush.msra.mxu0 %v838
    %866 = vmatmul.f32.gmra.mxu0 %v845
    %v867 = vpop.f32.mrf.mxu0
    %v868 = vadd.f32 %v843, %v867
    %869 = vmatmul.f32.gmra.mxu0 %v848
    %v870 = vpop.f32.mrf.mxu0
    %v871 = vadd.f32 %v843, %v870
    %872 = vdwg.mxu0
    %v873 = vmul.f32 %v868, 0.5
    %v874 = vmul.f32 %v871, 0.5
    %v875 = vrcp.pop 1.4142135
    %v876 = vmul.f32 1.4142135, %v875
    %v877 = vsub.f32 1.0, %v876
    %v878 = vmul.f32 %v875, %v877
    %v879 = vadd.f32 %v875, %v878
    %vm880 = vweird.f32 %v875
    %v881 = vsel %vm880, %v875, %v879
    %v882 = vmul.f32 %v868, %v881
    %v883 = vmul.f32 %v871, %v881
    %v884 = vmul.f32 %v882, %v882
    %v885 = vmin.f32 16.0, %v884
    %v886 = vmul.f32 %v885, 2.1237322e-06
    %v887 = vadd.f32 %v886, 0.00028619796
    %v888 = vmul.f32 %v885, %v887
    %v889 = vadd.f32 %v888, 0.0036580483
    %v890 = vmul.f32 %v885, %v889
    %v891 = vadd.f32 %v890, 0.05243302
    %v892 = vmul.f32 %v885, %v891
    %v893 = vadd.f32 %v892, 0.18741608
    %v894 = vmul.f32 %v885, %v893
    %v895 = vadd.f32 %v894, 1.1283791
    %v896 = vmul.f32 %v882, %v895
    %v897 = vmul.f32 %v885, 3.8918573e-05
    %v898 = vadd.f32 %v897, 0.001143296
    %v899 = vmul.f32 %v885, %v898
    %v900 = vadd.f32 %v899, 0.014752088
    %v901 = vmul.f32 %v885, %v900
    %v902 = vadd.f32 %v901, 0.112945676
    %v903 = vmul.f32 %v885, %v902
    %v904 = vadd.f32 %v903, 0.4994258
    %v905 = vmul.f32 %v885, %v904
    %v906 = vadd.f32 %v905, 1.0
    %v907 = vrcp.pop %v906
    %v908 = vmul.f32 %v906, %v907
    %v909 = vsub.f32 1.0, %v908
    %v910 = vmul.f32 %v907, %v909
    %v911 = vadd.f32 %v907, %v910
    %vm912 = vweird.f32 %v906
    %vm913 = vweird.f32 %v907
    %vm914 = vmor %vm912, %vm913
    %v915 = vsel %vm914, %v907, %v911
    %v916 = vand.u32 2147483647, %v906
    %vm917 = vcmp.eq.f32.partialorder %v916, 8.507059e+37
    %v918 = vand.u32 %v906, 2147483648
    %v919 = vor.u32 1.1754944e-38, %v918
    %v920 = vsel %vm917, %v919, %v915
    %v921 = vmul.f32 %v896, %v920
    %v922 = vmin.f32 %v921, 1.0
    %v923 = vmax.f32 %v922, -1.0
    %v924 = vmul.f32 %v883, %v883
    %v925 = vmin.f32 16.0, %v924
    %v926 = vmul.f32 %v925, 2.1237322e-06
    %v927 = vadd.f32 %v926, 0.00028619796
    %v928 = vmul.f32 %v925, %v927
    %v929 = vadd.f32 %v928, 0.0036580483
    %v930 = vmul.f32 %v925, %v929
    %v931 = vadd.f32 %v930, 0.05243302
    %v932 = vmul.f32 %v925, %v931
    %v933 = vadd.f32 %v932, 0.18741608
    %v934 = vmul.f32 %v925, %v933
    %v935 = vadd.f32 %v934, 1.1283791
    %v936 = vmul.f32 %v883, %v935
    %v937 = vmul.f32 %v925, 3.8918573e-05
    %v938 = vadd.f32 %v937, 0.001143296
    %v939 = vmul.f32 %v925, %v938
    %v940 = vadd.f32 %v939, 0.014752088
    %v941 = vmul.f32 %v925, %v940
    %v942 = vadd.f32 %v941, 0.112945676
    %v943 = vmul.f32 %v925, %v942
    %v944 = vadd.f32 %v943, 0.4994258
    %v945 = vmul.f32 %v925, %v944
    %v946 = vadd.f32 %v945, 1.0
    %v947 = vrcp.pop %v946
    %v948 = vmul.f32 %v946, %v947
    %v949 = vsub.f32 1.0, %v948
    %v950 = vmul.f32 %v947, %v949
    %v951 = vadd.f32 %v947, %v950
    %vm952 = vweird.f32 %v946
    %vm953 = vweird.f32 %v947
    %vm954 = vmor %vm952, %vm953
    %v955 = vsel %vm954, %v947, %v951
    %v956 = vand.u32 2147483647, %v946
    %vm957 = vcmp.eq.f32.partialorder %v956, 8.507059e+37
    %v958 = vand.u32 %v946, 2147483648
    %v959 = vor.u32 1.1754944e-38, %v958
    %v960 = vsel %vm957, %v959, %v955
    %v961 = vmul.f32 %v936, %v960
    %v962 = vmin.f32 %v961, 1.0
    %v963 = vmax.f32 %v962, -1.0
    %v964 = vadd.f32 %v923, 1.0
    %v965 = vadd.f32 %v963, 1.0
    %v966 = vmul.f32 %v873, %v964
    %v967 = vmul.f32 %v874, %v965
    %v968 = vld [vmem:[%s0 + $0x258] sm:$0xff]
    %v969 = vld [vmem:[%s0 + $0x260] sm:$0xff]
    %v970 = vld [vmem:[%s0 + $0x268] sm:$0xff]
    %v971 = vld [vmem:[%s0 + $0x270] sm:$0xff]
    %v972 = vld [vmem:[%s0 + $0x278] sm:$0xff]
    %v973 = vld [vmem:[%s0 + $0x280] sm:$0xff]
    %v974 = vld [vmem:[%s0 + $0x288] sm:$0xff]
    %v975 = vld [vmem:[%s0 + $0x290] sm:$0xff]
    %v976 = vld [vmem:[%s0 + $0x298] sm:$0x1]
    %v977 = vperm.slane %v976, 0
    %v979 = vsel %vm74, %v966, 0
    %v982 = vsel %vm74, %v967, 0
    %984 = vmatpush.msra.mxu0 0.0
    %985 = vmatpush.msra.mxu0 0.0
    %986 = vmatpush.msra.mxu0 0.0
    %987 = vmatpush.msra.mxu0 0.0
    %988 = vmatpush.msra.mxu0 0.0
    %989 = vmatpush.msra.mxu0 0.0
    %990 = vmatpush.msra.mxu0 0.0
    %991 = vmatpush.msra.mxu0 0.0
    %992 = vmatpush.msra.mxu0 %v975
    %993 = vmatpush.msra.mxu0 %v974
    %994 = vmatpush.msra.mxu0 %v973
    %995 = vmatpush.msra.mxu0 %v972
    %996 = vmatpush.msra.mxu0 %v971
    %997 = vmatpush.msra.mxu0 %v970
    %998 = vmatpush.msra.mxu0 %v969
    %999 = vmatpush.msra.mxu0 %v968
    %1000 = vmatmul.f32.gmra.mxu0 %v979
    %v1001 = vpop.f32.mrf.mxu0
    %v1002 = vadd.f32 %v977, %v1001
    %1003 = vmatmul.f32.gmra.mxu0 %v982
    %v1004 = vpop.f32.mrf.mxu0
    %v1005 = vadd.f32 %v977, %v1004
    %1006 = vdwg.mxu0
    %v1007 = vadd.f32 %v1002, %v836
    %v1008 = vadd.f32 %v1005, %v837
    %v1009 = vld [vmem:[%s0 + $0x2a0] sm:$0x1]
    %v1010 = vld [vmem:[%s0 + $0x2a8] sm:$0x1]
    %v1011 = vsel %vm141, %v1007, 0.0
    %1012 = vadd.xlane.f32.xlu0 %v1011
    %v1013 = vpop.xlane.xlu0 %1012
    %v1014 = vsel %vm141, %v1008, 0.0
    %1015 = vadd.xlane.f32.xlu0 %v1014
    %v1016 = vpop.xlane.xlu0 %1015
    %v1017 = vmul.f32 %v1013, %v196
    %v1018 = vmul.f32 %v1016, %v196
    %v1019 = vsub.f32 %v1007, %v1017
    %v1020 = vsub.f32 %v1008, %v1018
    %v1021 = vmul.f32 %v1019, %v1019
    %v1022 = vmul.f32 %v1020, %v1020
    %v1023 = vsel %vm141, %v1021, 0.0
    %1024 = vadd.xlane.f32.xlu0 %v1023
    %v1025 = vpop.xlane.xlu0 %1024
    %v1026 = vsel %vm141, %v1022, 0.0
    %1027 = vadd.xlane.f32.xlu0 %v1026
    %v1028 = vpop.xlane.xlu0 %1027
    %v1029 = vmul.f32 %v1025, %v196
    %v1030 = vmul.f32 %v1028, %v196
    %v1031 = vadd.f32 %v1029, 1e-12
    %v1032 = vadd.f32 %v1030, 1e-12
    %v1033 = vrsqrt.pop %v1031
    %v1034 = vmul.f32 %v1033, %v1031
    %v1035 = vmul.f32 %v1034, %v1033
    %v1036 = vmul.f32 0.5, %v1035
    %v1037 = vsub.f32 1.5, %v1036
    %v1038 = vmul.f32 %v1033, %v1037
    %vm1039 = vweird.f32 %v1031
    %vm1040 = vweird.f32 %v1033
    %vm1041 = vmor %vm1039, %vm1040
    %v1042 = vsel %vm1041, %v1033, %v1038
    %v1043 = vrsqrt.pop %v1032
    %v1044 = vmul.f32 %v1043, %v1032
    %v1045 = vmul.f32 %v1044, %v1043
    %v1046 = vmul.f32 0.5, %v1045
    %v1047 = vsub.f32 1.5, %v1046
    %v1048 = vmul.f32 %v1043, %v1047
    %vm1049 = vweird.f32 %v1032
    %vm1050 = vweird.f32 %v1043
    %vm1051 = vmor %vm1049, %vm1050
    %v1052 = vsel %vm1051, %v1043, %v1048
    %v1053 = vmul.f32 %v1019, %v1042
    %v1054 = vmul.f32 %v1020, %v1052
    %v1055 = vperm.slane %v1009, 0
    %v1056 = vmul.f32 %v1053, %v1055
    %v1057 = vmul.f32 %v1054, %v1055
    %v1058 = vperm.slane %v1010, 0
    %v1059 = vadd.f32 %v1056, %v1058
    %v1060 = vadd.f32 %v1057, %v1058
    %v1061 = vld [vmem:[%s0 + $0x2b0] sm:$0xff]
    %v1062 = vld [vmem:[%s0 + $0x2b8] sm:$0xff]
    %v1063 = vld [vmem:[%s0 + $0x2c0] sm:$0xff]
    %v1064 = vld [vmem:[%s0 + $0x2c8] sm:$0xff]
    %v1065 = vld [vmem:[%s0 + $0x2d0] sm:$0x1]
    %v1066 = vperm.slane %v1065, 0
    %v1068 = vsel %vm141, %v1059, 0
    %v1071 = vsel %vm141, %v1060, 0
    %1073 = vmatpush.msra.mxu0 0.0
    %1074 = vmatpush.msra.mxu0 0.0
    %1075 = vmatpush.msra.mxu0 0.0
    %1076 = vmatpush.msra.mxu0 0.0
    %1077 = vmatpush.msra.mxu0 0.0
    %1078 = vmatpush.msra.mxu0 0.0
    %1079 = vmatpush.msra.mxu0 0.0
    %1080 = vmatpush.msra.mxu0 0.0
    %1081 = vmatpush.msra.mxu0 0.0
    %1082 = vmatpush.msra.mxu0 0.0
    %1083 = vmatpush.msra.mxu0 0.0
    %1084 = vmatpush.msra.mxu0 0.0
    %1085 = vmatpush.msra.mxu0 %v1064
    %1086 = vmatpush.msra.mxu0 %v1063
    %1087 = vmatpush.msra.mxu0 %v1062
    %1088 = vmatpush.msra.mxu0 %v1061
    %1089 = vmatmul.f32.gmra.mxu0 %v1068
    %v1090 = vpop.f32.mrf.mxu0
    %v1091 = vadd.f32 %v1066, %v1090
    %1092 = vmatmul.f32.gmra.mxu0 %v1071
    %v1093 = vpop.f32.mrf.mxu0
    %v1094 = vadd.f32 %v1066, %v1093
    %1095 = vdwg.mxu0
    %v1096 = vld [vmem:[%s0 + $0x2d8] sm:$0xff]
    %v1097 = vld [vmem:[%s0 + $0x2e0] sm:$0xff]
    %v1098 = vld [vmem:[%s0 + $0x2e8] sm:$0xff]
    %v1099 = vld [vmem:[%s0 + $0x2f0] sm:$0xff]
    %v1100 = vld [vmem:[%s0 + $0x2f8] sm:$0x1]
    %v1101 = vperm.slane %v1100, 0
    %1102 = vmatpush.msra.mxu0 0.0
    %1103 = vmatpush.msra.mxu0 0.0
    %1104 = vmatpush.msra.mxu0 0.0
    %1105 = vmatpush.msra.mxu0 0.0
    %1106 = vmatpush.msra.mxu0 0.0
    %1107 = vmatpush.msra.mxu0 0.0
    %1108 = vmatpush.msra.mxu0 0.0
    %1109 = vmatpush.msra.mxu0 0.0
    %1110 = vmatpush.msra.mxu0 0.0
    %1111 = vmatpush.msra.mxu0 0.0
    %1112 = vmatpush.msra.mxu0 0.0
    %1113 = vmatpush.msra.mxu0 0.0
    %1114 = vmatpush.msra.mxu0 %v1099
    %1115 = vmatpush.msra.mxu0 %v1098
    %1116 = vmatpush.msra.mxu0 %v1097
    %1117 = vmatpush.msra.mxu0 %v1096
    %1118 = vmatmul.f32.gmra.mxu0 %v1068
    %v1119 = vpop.f32.mrf.mxu0
    %v1120 = vadd.f32 %v1101, %v1119
    %1121 = vmatmul.f32.gmra.mxu0 %v1071
    %v1122 = vpop.f32.mrf.mxu0
    %v1123 = vadd.f32 %v1101, %v1122
    %1124 = vdwg.mxu0
    %v1125 = vld [vmem:[%s0 + $0x300] sm:$0xff]
    %v1126 = vld [vmem:[%s0 + $0x308] sm:$0xff]
    %v1127 = vld [vmem:[%s0 + $0x310] sm:$0xff]
    %v1128 = vld [vmem:[%s0 + $0x318] sm:$0xff]
    %v1129 = vld [vmem:[%s0 + $0x320] sm:$0x1]
    %v1130 = vperm.slane %v1129, 0
    %1131 = vmatpush.msra.mxu0 0.0
    %1132 = vmatpush.msra.mxu0 0.0
    %1133 = vmatpush.msra.mxu0 0.0
    %1134 = vmatpush.msra.mxu0 0.0
    %1135 = vmatpush.msra.mxu0 0.0
    %1136 = vmatpush.msra.mxu0 0.0
    %1137 = vmatpush.msra.mxu0 0.0
    %1138 = vmatpush.msra.mxu0 0.0
    %1139 = vmatpush.msra.mxu0 0.0
    %1140 = vmatpush.msra.mxu0 0.0
    %1141 = vmatpush.msra.mxu0 0.0
    %1142 = vmatpush.msra.mxu0 0.0
    %1143 = vmatpush.msra.mxu0 %v1128
    %1144 = vmatpush.msra.mxu0 %v1127
    %1145 = vmatpush.msra.mxu0 %v1126
    %1146 = vmatpush.msra.mxu0 %v1125
    %1147 = vmatmul.f32.gmra.mxu0 %v1068
    %v1148 = vpop.f32.mrf.mxu0
    %v1149 = vadd.f32 %v1130, %v1148
    %1150 = vmatmul.f32.gmra.mxu0 %v1071
    %v1151 = vpop.f32.mrf.mxu0
    %v1152 = vadd.f32 %v1130, %v1151
    %1153 = vdwg.mxu0
    %v1155 = vsel %vm20, %v1091, 0
    %v1158 = vsel %vm20, %v1120, 0
    %1160 = vmatpush.xpose.msra.mxu0 0.0
    %1161 = vmatpush.xpose.msra.mxu0 0.0
    %1162 = vmatpush.xpose.msra.mxu0 0.0
    %1163 = vmatpush.xpose.msra.mxu0 0.0
    %1164 = vmatpush.xpose.msra.mxu0 0.0
    %1165 = vmatpush.xpose.msra.mxu0 0.0
    %1166 = vmatpush.xpose.msra.mxu0 0.0
    %1167 = vmatpush.xpose.msra.mxu0 0.0
    %1168 = vmatpush.xpose.msra.mxu0 0.0
    %1169 = vmatpush.xpose.msra.mxu0 0.0
    %1170 = vmatpush.xpose.msra.mxu0 0.0
    %1171 = vmatpush.xpose.msra.mxu0 0.0
    %1172 = vmatpush.xpose.msra.mxu0 0.0
    %1173 = vmatpush.xpose.msra.mxu0 0.0
    %1174 = vmatpush.xpose.msra.mxu0 0.0
    %1175 = vmatpush.xpose.msra.mxu0 %v1158
    %1176 = vmatmul.f32.gmra.mxu0 %v1155
    %v1177 = vpop.f32.mrf.mxu0
    %v1178 = vadd.f32 0.0, %v1177
    %1179 = vdwg.mxu0
    %v1181 = vsel %vm20, %v1094, 0
    %v1184 = vsel %vm20, %v1123, 0
    %1186 = vmatpush.xpose.msra.mxu0 0.0
    %1187 = vmatpush.xpose.msra.mxu0 0.0
    %1188 = vmatpush.xpose.msra.mxu0 0.0
    %1189 = vmatpush.xpose.msra.mxu0 0.0
    %1190 = vmatpush.xpose.msra.mxu0 0.0
    %1191 = vmatpush.xpose.msra.mxu0 0.0
    %1192 = vmatpush.xpose.msra.mxu0 0.0
    %1193 = vmatpush.xpose.msra.mxu0 0.0
    %1194 = vmatpush.xpose.msra.mxu0 0.0
    %1195 = vmatpush.xpose.msra.mxu0 0.0
    %1196 = vmatpush.xpose.msra.mxu0 0.0
    %1197 = vmatpush.xpose.msra.mxu0 0.0
    %1198 = vmatpush.xpose.msra.mxu0 0.0
    %1199 = vmatpush.xpose.msra.mxu0 0.0
    %1200 = vmatpush.xpose.msra.mxu0 0.0
    %1201 = vmatpush.xpose.msra.mxu0 %v1184
    %1202 = vmatmul.f32.gmra.mxu0 %v1181
    %v1203 = vpop.f32.mrf.mxu0
    %v1204 = vadd.f32 0.0, %v1203
    %1205 = vdwg.mxu0
    %v1206 = vmul.f32 %v1178, 0.25
    %v1207 = vmul.f32 %v1204, 0.25
    %v1208 = vsel %vm388, %v1206, -inf
    %1209 = vmax.xlane.f32.xlu0 %v1208
    %v1210 = vpop.xlane.xlu0 %1209
    %v1211 = vsel %vm388, %v1207, -inf
    %1212 = vmax.xlane.f32.xlu0 %v1211
    %v1213 = vpop.xlane.xlu0 %1212
    %v1214 = vsub.f32 %v1206, %v1210
    %v1215 = vsub.f32 %v1207, %v1213
    %v1216 = vmul.f32 %v1214, 1.442695
    %v1217 = vpow.pop %v1216
    %v1218 = vmul.f32 %v1215, 1.442695
    %v1219 = vpow.pop %v1218
    %v1220 = vsel %vm388, %v1217, 0.0
    %1221 = vadd.xlane.f32.xlu0 %v1220
    %v1222 = vpop.xlane.xlu0 %1221
    %v1223 = vsel %vm388, %v1219, 0.0
    %1224 = vadd.xlane.f32.xlu0 %v1223
    %v1225 = vpop.xlane.xlu0 %1224
    %v1226 = vrcp.pop %v1222
    %v1227 = vmul.f32 %v1222, %v1226
    %v1228 = vsub.f32 1.0, %v1227
    %v1229 = vmul.f32 %v1226, %v1228
    %v1230 = vadd.f32 %v1226, %v1229
    %vm1231 = vweird.f32 %v1222
    %vm1232 = vweird.f32 %v1226
    %vm1233 = vmor %vm1231, %vm1232
    %v1234 = vsel %vm1233, %v1226, %v1230
    %v1235 = vand.u32 2147483647, %v1222
    %vm1236 = vcmp.eq.f32.partialorder %v1235, 8.507059e+37
    %v1237 = vand.u32 %v1222, 2147483648
    %v1238 = vor.u32 1.1754944e-38, %v1237
    %v1239 = vsel %vm1236, %v1238, %v1234
    %v1240 = vmul.f32 %v1217, %v1239
    %v1241 = vrcp.pop %v1225
    %v1242 = vmul.f32 %v1225, %v1241
    %v1243 = vsub.f32 1.0, %v1242
    %v1244 = vmul.f32 %v1241, %v1243
    %v1245 = vadd.f32 %v1241, %v1244
    %vm1246 = vweird.f32 %v1225
    %vm1247 = vweird.f32 %v1241
    %vm1248 = vmor %vm1246, %vm1247
    %v1249 = vsel %vm1248, %v1241, %v1245
    %v1250 = vand.u32 2147483647, %v1225
    %vm1251 = vcmp.eq.f32.partialorder %v1250, 8.507059e+37
    %v1252 = vand.u32 %v1225, 2147483648
    %v1253 = vor.u32 1.1754944e-38, %v1252
    %v1254 = vsel %vm1251, %v1253, %v1249
    %v1255 = vmul.f32 %v1219, %v1254
    %v1257 = vsel %vm388, %v1240, 0
    %1259 = vmatpush.msra.mxu0 0.0
    %1260 = vmatpush.msra.mxu0 0.0
    %1261 = vmatpush.msra.mxu0 0.0
    %1262 = vmatpush.msra.mxu0 0.0
    %1263 = vmatpush.msra.mxu0 0.0
    %1264 = vmatpush.msra.mxu0 0.0
    %1265 = vmatpush.msra.mxu0 0.0
    %1266 = vmatpush.msra.mxu0 0.0
    %1267 = vmatpush.msra.mxu0 0.0
    %1268 = vmatpush.msra.mxu0 0.0
    %1269 = vmatpush.msra.mxu0 0.0
    %1270 = vmatpush.msra.mxu0 0.0
    %1271 = vmatpush.msra.mxu0 0.0
    %1272 = vmatpush.msra.mxu0 0.0
    %1273 = vmatpush.msra.mxu0 0.0
    %1274 = vmatpush.msra.mxu0 %v1149
    %1275 = vmatmul.f32.gmra.mxu0 %v1257
    %v1276 = vpop.f32.mrf.mxu0
    %v1277 = vadd.f32 0.0, %v1276
    %1278 = vdwg.mxu0
    %v1280 = vsel %vm388, %v1255, 0
    %1282 = vmatpush.msra.mxu0 0.0
    %1283 = vmatpush.msra.mxu0 0.0
    %1284 = vmatpush.msra.mxu0 0.0
    %1285 = vmatpush.msra.mxu0 0.0
    %1286 = vmatpush.msra.mxu0 0.0
    %1287 = vmatpush.msra.mxu0 0.0
    %1288 = vmatpush.msra.mxu0 0.0
    %1289 = vmatpush.msra.mxu0 0.0
    %1290 = vmatpush.msra.mxu0 0.0
    %1291 = vmatpush.msra.mxu0 0.0
    %1292 = vmatpush.msra.mxu0 0.0
    %1293 = vmatpush.msra.mxu0 0.0
    %1294 = vmatpush.msra.mxu0 0.0
    %1295 = vmatpush.msra.mxu0 0.0
    %1296 = vmatpush.msra.mxu0 0.0
    %1297 = vmatpush.msra.mxu0 %v1152
    %1298 = vmatmul.f32.gmra.mxu0 %v1280
    %v1299 = vpop.f32.mrf.mxu0
    %v1300 = vadd.f32 0.0, %v1299
    %1301 = vdwg.mxu0
    %v1302 = vld [vmem:[%s0 + $0x328] sm:$0xff]
    %v1303 = vld [vmem:[%s0 + $0x330] sm:$0xff]
    %v1304 = vld [vmem:[%s0 + $0x338] sm:$0xff]
    %v1305 = vld [vmem:[%s0 + $0x340] sm:$0xff]
    %v1306 = vld [vmem:[%s0 + $0x348] sm:$0xff]
    %v1307 = vld [vmem:[%s0 + $0x350] sm:$0xff]
    %v1308 = vld [vmem:[%s0 + $0x358] sm:$0x1]
    %v1309 = vperm.slane %v1308, 0
    %1310 = vmatpush.msra.mxu0 0.0
    %1311 = vmatpush.msra.mxu0 0.0
    %1312 = vmatpush.msra.mxu0 0.0
    %1313 = vmatpush.msra.mxu0 0.0
    %1314 = vmatpush.msra.mxu0 0.0
    %1315 = vmatpush.msra.mxu0 0.0
    %1316 = vmatpush.msra.mxu0 0.0
    %1317 = vmatpush.msra.mxu0 0.0
    %1318 = vmatpush.msra.mxu0 0.0
    %1319 = vmatpush.msra.mxu0 0.0
    %1320 = vmatpush.msra.mxu0 0.0
    %1321 = vmatpush.msra.mxu0 0.0
    %1322 = vmatpush.msra.mxu0 %v1307
    %1323 = vmatpush.msra.mxu0 %v1306
    %1324 = vmatpush.msra.mxu0 %v1305
    %1325 = vmatpush.msra.mxu0 %v1304
    %1326 = vmatmul.f32.gmra.mxu0 %v1068
    %v1327 = vpop.f32.mrf.mxu0
    %v1328 = vadd.f32 %v1309, %v1327
    %1329 = vmatmul.f32.gmra.mxu0 %v1071
    %v1330 = vpop.f32.mrf.mxu0
    %v1331 = vadd.f32 %v1309, %v1330
    %1332 = vdwg.mxu0
    %v1333 = vld [vmem:[%s0 + $0x360] sm:$0xff]
    %v1334 = vld [vmem:[%s0 + $0x368] sm:$0xff]
    %v1335 = vld [vmem:[%s0 + $0x370] sm:$0xff]
    %v1336 = vld [vmem:[%s0 + $0x378] sm:$0xff]
    %v1337 = vld [vmem:[%s0 + $0x380] sm:$0x1]
    %v1338 = vperm.slane %v1337, 0
    %1339 = vmatpush.msra.mxu0 0.0
    %1340 = vmatpush.msra.mxu0 0.0
    %1341 = vmatpush.msra.mxu0 0.0
    %1342 = vmatpush.msra.mxu0 0.0
    %1343 = vmatpush.msra.mxu0 0.0
    %1344 = vmatpush.msra.mxu0 0.0
    %1345 = vmatpush.msra.mxu0 0.0
    %1346 = vmatpush.msra.mxu0 0.0
    %1347 = vmatpush.msra.mxu0 0.0
    %1348 = vmatpush.msra.mxu0 0.0
    %1349 = vmatpush.msra.mxu0 0.0
    %1350 = vmatpush.msra.mxu0 0.0
    %1351 = vmatpush.msra.mxu0 %v1336
    %1352 = vmatpush.msra.mxu0 %v1335
    %1353 = vmatpush.msra.mxu0 %v1334
    %1354 = vmatpush.msra.mxu0 %v1333
    %1355 = vmatmul.f32.gmra.mxu0 %v1068
    %v1356 = vpop.f32.mrf.mxu0
    %v1357 = vadd.f32 %v1338, %v1356
    %1358 = vmatmul.f32.gmra.mxu0 %v1071
    %v1359 = vpop.f32.mrf.mxu0
    %v1360 = vadd.f32 %v1338, %v1359
    %1361 = vdwg.mxu0
    %v1362 = vld [vmem:[%s0 + $0x388] sm:$0xff]
    %v1363 = vld [vmem:[%s0 + $0x390] sm:$0xff]
    %v1364 = vld [vmem:[%s0 + $0x398] sm:$0xff]
    %v1365 = vld [vmem:[%s0 + $0x3a0] sm:$0xff]
    %v1366 = vld [vmem:[%s0 + $0x3a8] sm:$0x1]
    %v1367 = vperm.slane %v1366, 0
    %1368 = vmatpush.msra.mxu0 0.0
    %1369 = vmatpush.msra.mxu0 0.0
    %1370 = vmatpush.msra.mxu0 0.0
    %1371 = vmatpush.msra.mxu0 0.0
    %1372 = vmatpush.msra.mxu0 0.0
    %1373 = vmatpush.msra.mxu0 0.0
    %1374 = vmatpush.msra.mxu0 0.0
    %1375 = vmatpush.msra.mxu0 0.0
    %1376 = vmatpush.msra.mxu0 0.0
    %1377 = vmatpush.msra.mxu0 0.0
    %1378 = vmatpush.msra.mxu0 0.0
    %1379 = vmatpush.msra.mxu0 0.0
    %1380 = vmatpush.msra.mxu0 %v1365
    %1381 = vmatpush.msra.mxu0 %v1364
    %1382 = vmatpush.msra.mxu0 %v1363
    %1383 = vmatpush.msra.mxu0 %v1362
    %1384 = vmatmul.f32.gmra.mxu0 %v1068
    %v1385 = vpop.f32.mrf.mxu0
    %v1386 = vadd.f32 %v1367, %v1385
    %1387 = vmatmul.f32.gmra.mxu0 %v1071
    %v1388 = vpop.f32.mrf.mxu0
    %v1389 = vadd.f32 %v1367, %v1388
    %1390 = vdwg.mxu0
    %v1392 = vsel %vm20, %v1328, 0
    %v1395 = vsel %vm20, %v1357, 0
    %1397 = vmatpush.xpose.msra.mxu0 0.0
    %1398 = vmatpush.xpose.msra.mxu0 0.0
    %1399 = vmatpush.xpose.msra.mxu0 0.0
    %1400 = vmatpush.xpose.msra.mxu0 0.0
    %1401 = vmatpush.xpose.msra.mxu0 0.0
    %1402 = vmatpush.xpose.msra.mxu0 0.0
    %1403 = vmatpush.xpose.msra.mxu0 0.0
    %1404 = vmatpush.xpose.msra.mxu0 0.0
    %1405 = vmatpush.xpose.msra.mxu0 0.0
    %1406 = vmatpush.xpose.msra.mxu0 0.0
    %1407 = vmatpush.xpose.msra.mxu0 0.0
    %1408 = vmatpush.xpose.msra.mxu0 0.0
    %1409 = vmatpush.xpose.msra.mxu0 0.0
    %1410 = vmatpush.xpose.msra.mxu0 0.0
    %1411 = vmatpush.xpose.msra.mxu0 0.0
    %1412 = vmatpush.xpose.msra.mxu0 %v1395
    %1413 = vmatmul.f32.gmra.mxu0 %v1392
    %v1414 = vpop.f32.mrf.mxu0
    %v1415 = vadd.f32 0.0, %v1414
    %1416 = vdwg.mxu0
    %v1418 = vsel %vm20, %v1331, 0
    %v1421 = vsel %vm20, %v1360, 0
    %1423 = vmatpush.xpose.msra.mxu0 0.0
    %1424 = vmatpush.xpose.msra.mxu0 0.0
    %1425 = vmatpush.xpose.msra.mxu0 0.0
    %1426 = vmatpush.xpose.msra.mxu0 0.0
    %1427 = vmatpush.xpose.msra.mxu0 0.0
    %1428 = vmatpush.xpose.msra.mxu0 0.0
    %1429 = vmatpush.xpose.msra.mxu0 0.0
    %1430 = vmatpush.xpose.msra.mxu0 0.0
    %1431 = vmatpush.xpose.msra.mxu0 0.0
    %1432 = vmatpush.xpose.msra.mxu0 0.0
    %1433 = vmatpush.xpose.msra.mxu0 0.0
    %1434 = vmatpush.xpose.msra.mxu0 0.0
    %1435 = vmatpush.xpose.msra.mxu0 0.0
    %1436 = vmatpush.xpose.msra.mxu0 0.0
    %1437 = vmatpush.xpose.msra.mxu0 0.0
    %1438 = vmatpush.xpose.msra.mxu0 %v1421
    %1439 = vmatmul.f32.gmra.mxu0 %v1418
    %v1440 = vpop.f32.mrf.mxu0
    %v1441 = vadd.f32 0.0, %v1440
    %1442 = vdwg.mxu0
    %v1443 = vmul.f32 %v1415, 0.25
    %v1444 = vmul.f32 %v1441, 0.25
    %v1445 = vsel %vm388, %v1443, -inf
    %1446 = vmax.xlane.f32.xlu0 %v1445
    %v1447 = vpop.xlane.xlu0 %1446
    %v1448 = vsel %vm388, %v1444, -inf
    %1449 = vmax.xlane.f32.xlu0 %v1448
    %v1450 = vpop.xlane.xlu0 %1449
    %v1451 = vsub.f32 %v1443, %v1447
    %v1452 = vsub.f32 %v1444, %v1450
    %v1453 = vmul.f32 %v1451, 1.442695
    %v1454 = vpow.pop %v1453
    %v1455 = vmul.f32 %v1452, 1.442695
    %v1456 = vpow.pop %v1455
    %v1457 = vsel %vm388, %v1454, 0.0
    %1458 = vadd.xlane.f32.xlu0 %v1457
    %v1459 = vpop.xlane.xlu0 %1458
    %v1460 = vsel %vm388, %v1456, 0.0
    %1461 = vadd.xlane.f32.xlu0 %v1460
    %v1462 = vpop.xlane.xlu0 %1461
    %v1463 = vrcp.pop %v1459
    %v1464 = vmul.f32 %v1459, %v1463
    %v1465 = vsub.f32 1.0, %v1464
    %v1466 = vmul.f32 %v1463, %v1465
    %v1467 = vadd.f32 %v1463, %v1466
    %vm1468 = vweird.f32 %v1459
    %vm1469 = vweird.f32 %v1463
    %vm1470 = vmor %vm1468, %vm1469
    %v1471 = vsel %vm1470, %v1463, %v1467
    %v1472 = vand.u32 2147483647, %v1459
    %vm1473 = vcmp.eq.f32.partialorder %v1472, 8.507059e+37
    %v1474 = vand.u32 %v1459, 2147483648
    %v1475 = vor.u32 1.1754944e-38, %v1474
    %v1476 = vsel %vm1473, %v1475, %v1471
    %v1477 = vmul.f32 %v1454, %v1476
    %v1478 = vrcp.pop %v1462
    %v1479 = vmul.f32 %v1462, %v1478
    %v1480 = vsub.f32 1.0, %v1479
    %v1481 = vmul.f32 %v1478, %v1480
    %v1482 = vadd.f32 %v1478, %v1481
    %vm1483 = vweird.f32 %v1462
    %vm1484 = vweird.f32 %v1478
    %vm1485 = vmor %vm1483, %vm1484
    %v1486 = vsel %vm1485, %v1478, %v1482
    %v1487 = vand.u32 2147483647, %v1462
    %vm1488 = vcmp.eq.f32.partialorder %v1487, 8.507059e+37
    %v1489 = vand.u32 %v1462, 2147483648
    %v1490 = vor.u32 1.1754944e-38, %v1489
    %v1491 = vsel %vm1488, %v1490, %v1486
    %v1492 = vmul.f32 %v1456, %v1491
    %v1494 = vsel %vm388, %v1477, 0
    %1496 = vmatpush.msra.mxu0 0.0
    %1497 = vmatpush.msra.mxu0 0.0
    %1498 = vmatpush.msra.mxu0 0.0
    %1499 = vmatpush.msra.mxu0 0.0
    %1500 = vmatpush.msra.mxu0 0.0
    %1501 = vmatpush.msra.mxu0 0.0
    %1502 = vmatpush.msra.mxu0 0.0
    %1503 = vmatpush.msra.mxu0 0.0
    %1504 = vmatpush.msra.mxu0 0.0
    %1505 = vmatpush.msra.mxu0 0.0
    %1506 = vmatpush.msra.mxu0 0.0
    %1507 = vmatpush.msra.mxu0 0.0
    %1508 = vmatpush.msra.mxu0 0.0
    %1509 = vmatpush.msra.mxu0 0.0
    %1510 = vmatpush.msra.mxu0 0.0
    %1511 = vmatpush.msra.mxu0 %v1386
    %1512 = vmatmul.f32.gmra.mxu0 %v1494
    %v1513 = vpop.f32.mrf.mxu0
    %v1514 = vadd.f32 0.0, %v1513
    %1515 = vdwg.mxu0
    %v1517 = vsel %vm388, %v1492, 0
    %1519 = vmatpush.msra.mxu0 0.0
    %1520 = vmatpush.msra.mxu0 0.0
    %1521 = vmatpush.msra.mxu0 0.0
    %1522 = vmatpush.msra.mxu0 0.0
    %1523 = vmatpush.msra.mxu0 0.0
    %1524 = vmatpush.msra.mxu0 0.0
    %1525 = vmatpush.msra.mxu0 0.0
    %1526 = vmatpush.msra.mxu0 0.0
    %1527 = vmatpush.msra.mxu0 0.0
    %1528 = vmatpush.msra.mxu0 0.0
    %1529 = vmatpush.msra.mxu0 0.0
    %1530 = vmatpush.msra.mxu0 0.0
    %1531 = vmatpush.msra.mxu0 0.0
    %1532 = vmatpush.msra.mxu0 0.0
    %1533 = vmatpush.msra.mxu0 0.0
    %1534 = vmatpush.msra.mxu0 %v1389
    %1535 = vmatmul.f32.gmra.mxu0 %v1517
    %v1536 = vpop.f32.mrf.mxu0
    %v1537 = vadd.f32 0.0, %v1536
    %1538 = vdwg.mxu0
    %v1539 = vld [vmem:[%s0 + $0x3b0] sm:$0xff]
    %v1540 = vld [vmem:[%s0 + $0x3b8] sm:$0xff]
    %v1542 = vsel %vm20, %v1514, 0
    %v1545 = vsel %vm20, %v1537, 0
    %1547 = vmatpush.msra.mxu0 0.0
    %1548 = vmatpush.msra.mxu0 0.0
    %1549 = vmatpush.msra.mxu0 0.0
    %1550 = vmatpush.msra.mxu0 0.0
    %1551 = vmatpush.msra.mxu0 0.0
    %1552 = vmatpush.msra.mxu0 0.0
    %1553 = vmatpush.msra.mxu0 0.0
    %1554 = vmatpush.msra.mxu0 0.0
    %1555 = vmatpush.msra.mxu0 0.0
    %1556 = vmatpush.msra.mxu0 0.0
    %1557 = vmatpush.msra.mxu0 0.0
    %1558 = vmatpush.msra.mxu0 0.0
    %1559 = vmatpush.msra.mxu0 0.0
    %1560 = vmatpush.msra.mxu0 0.0
    %1561 = vmatpush.msra.mxu0 %v1540
    %1562 = vmatpush.msra.mxu0 %v1539
    %1563 = vmatmul.f32.gmra.mxu0 %v1542
    %v1564 = vpop.f32.mrf.mxu0
    %v1565 = vadd.f32 0.0, %v1564
    %1566 = vmatmul.f32.gmra.mxu0 %v1545
    %v1567 = vpop.f32.mrf.mxu0
    %v1568 = vadd.f32 0.0, %v1567
    %1569 = vdwg.mxu0
    %v1571 = vsel %vm20, %v1277, 0
    %v1574 = vsel %vm20, %v1300, 0
    %1576 = vmatpush.msra.mxu0 0.0
    %1577 = vmatpush.msra.mxu0 0.0
    %1578 = vmatpush.msra.mxu0 0.0
    %1579 = vmatpush.msra.mxu0 0.0
    %1580 = vmatpush.msra.mxu0 0.0
    %1581 = vmatpush.msra.mxu0 0.0
    %1582 = vmatpush.msra.mxu0 0.0
    %1583 = vmatpush.msra.mxu0 0.0
    %1584 = vmatpush.msra.mxu0 0.0
    %1585 = vmatpush.msra.mxu0 0.0
    %1586 = vmatpush.msra.mxu0 0.0
    %1587 = vmatpush.msra.mxu0 0.0
    %1588 = vmatpush.msra.mxu0 0.0
    %1589 = vmatpush.msra.mxu0 0.0
    %1590 = vmatpush.msra.mxu0 %v1303
    %1591 = vmatpush.msra.mxu0 %v1302
    %1592 = vmatmul.f32.gmra.mxu0 %v1571
    %v1593 = vpop.f32.mrf.mxu0
    %v1594 = vadd.f32 %v1565, %v1593
    %1595 = vmatmul.f32.gmra.mxu0 %v1574
    %v1596 = vpop.f32.mrf.mxu0
    %v1597 = vadd.f32 %v1568, %v1596
    %1598 = vdwg.mxu0
    %v1599 = vld [vmem:[%s0 + $0x3c0] sm:$0x1]
    %v1600 = vperm.slane %v1599, 0
    %v1601 = vadd.f32 %v1594, %v1600
    %v1602 = vadd.f32 %v1597, %v1600
    %v1603 = vadd.f32 %v1601, %v1059
    %v1604 = vadd.f32 %v1602, %v1060
    %v1605 = vld [vmem:[%s0 + $0x3c8] sm:$0x1]
    %v1606 = vld [vmem:[%s0 + $0x3d0] sm:$0x1]
    %v1607 = vsel %vm141, %v1603, 0.0
    %1608 = vadd.xlane.f32.xlu0 %v1607
    %v1609 = vpop.xlane.xlu0 %1608
    %v1610 = vsel %vm141, %v1604, 0.0
    %1611 = vadd.xlane.f32.xlu0 %v1610
    %v1612 = vpop.xlane.xlu0 %1611
    %v1613 = vmul.f32 %v1609, %v196
    %v1614 = vmul.f32 %v1612, %v196
    %v1615 = vsub.f32 %v1603, %v1613
    %v1616 = vsub.f32 %v1604, %v1614
    %v1617 = vmul.f32 %v1615, %v1615
    %v1618 = vmul.f32 %v1616, %v1616
    %v1619 = vsel %vm141, %v1617, 0.0
    %1620 = vadd.xlane.f32.xlu0 %v1619
    %v1621 = vpop.xlane.xlu0 %1620
    %v1622 = vsel %vm141, %v1618, 0.0
    %1623 = vadd.xlane.f32.xlu0 %v1622
    %v1624 = vpop.xlane.xlu0 %1623
    %v1625 = vmul.f32 %v1621, %v196
    %v1626 = vmul.f32 %v1624, %v196
    %v1627 = vadd.f32 %v1625, 1e-12
    %v1628 = vadd.f32 %v1626, 1e-12
    %v1629 = vrsqrt.pop %v1627
    %v1630 = vmul.f32 %v1629, %v1627
    %v1631 = vmul.f32 %v1630, %v1629
    %v1632 = vmul.f32 0.5, %v1631
    %v1633 = vsub.f32 1.5, %v1632
    %v1634 = vmul.f32 %v1629, %v1633
    %vm1635 = vweird.f32 %v1627
    %vm1636 = vweird.f32 %v1629
    %vm1637 = vmor %vm1635, %vm1636
    %v1638 = vsel %vm1637, %v1629, %v1634
    %v1639 = vrsqrt.pop %v1628
    %v1640 = vmul.f32 %v1639, %v1628
    %v1641 = vmul.f32 %v1640, %v1639
    %v1642 = vmul.f32 0.5, %v1641
    %v1643 = vsub.f32 1.5, %v1642
    %v1644 = vmul.f32 %v1639, %v1643
    %vm1645 = vweird.f32 %v1628
    %vm1646 = vweird.f32 %v1639
    %vm1647 = vmor %vm1645, %vm1646
    %v1648 = vsel %vm1647, %v1639, %v1644
    %v1649 = vmul.f32 %v1615, %v1638
    %v1650 = vmul.f32 %v1616, %v1648
    %v1651 = vperm.slane %v1605, 0
    %v1652 = vmul.f32 %v1649, %v1651
    %v1653 = vmul.f32 %v1650, %v1651
    %v1654 = vperm.slane %v1606, 0
    %v1655 = vadd.f32 %v1652, %v1654
    %v1656 = vadd.f32 %v1653, %v1654
    %v1657 = vld [vmem:[%s0 + $0x3d8] sm:$0xff]
    %v1658 = vld [vmem:[%s0 + $0x3e0] sm:$0xff]
    %v1659 = vld [vmem:[%s0 + $0x3e8] sm:$0xff]
    %v1660 = vld [vmem:[%s0 + $0x3f0] sm:$0xff]
    %v1661 = vld [vmem:[%s0 + $0x3f8] sm:$0x1]
    %v1662 = vperm.slane %v1661, 0
    %v1664 = vsel %vm141, %v1655, 0
    %v1667 = vsel %vm141, %v1656, 0
    %1669 = vmatpush.msra.mxu0 0.0
    %1670 = vmatpush.msra.mxu0 0.0
    %1671 = vmatpush.msra.mxu0 0.0
    %1672 = vmatpush.msra.mxu0 0.0
    %1673 = vmatpush.msra.mxu0 0.0
    %1674 = vmatpush.msra.mxu0 0.0
    %1675 = vmatpush.msra.mxu0 0.0
    %1676 = vmatpush.msra.mxu0 0.0
    %1677 = vmatpush.msra.mxu0 0.0
    %1678 = vmatpush.msra.mxu0 0.0
    %1679 = vmatpush.msra.mxu0 0.0
    %1680 = vmatpush.msra.mxu0 0.0
    %1681 = vmatpush.msra.mxu0 %v1660
    %1682 = vmatpush.msra.mxu0 %v1659
    %1683 = vmatpush.msra.mxu0 %v1658
    %1684 = vmatpush.msra.mxu0 %v1657
    %1685 = vmatmul.f32.gmra.mxu0 %v1664
    %v1686 = vpop.f32.mrf.mxu0
    %v1687 = vadd.f32 %v1662, %v1686
    %1688 = vmatmul.f32.gmra.mxu0 %v1667
    %v1689 = vpop.f32.mrf.mxu0
    %v1690 = vadd.f32 %v1662, %v1689
    %1691 = vdwg.mxu0
    %v1692 = vmul.f32 %v1687, 0.5
    %v1693 = vmul.f32 %v1690, 0.5
    %v1694 = vmul.f32 %v1687, %v881
    %v1695 = vmul.f32 %v1690, %v881
    %v1696 = vmul.f32 %v1694, %v1694
    %v1697 = vmin.f32 16.0, %v1696
    %v1698 = vmul.f32 %v1697, 2.1237322e-06
    %v1699 = vadd.f32 %v1698, 0.00028619796
    %v1700 = vmul.f32 %v1697, %v1699
    %v1701 = vadd.f32 %v1700, 0.0036580483
    %v1702 = vmul.f32 %v1697, %v1701
    %v1703 = vadd.f32 %v1702, 0.05243302
    %v1704 = vmul.f32 %v1697, %v1703
    %v1705 = vadd.f32 %v1704, 0.18741608
    %v1706 = vmul.f32 %v1697, %v1705
    %v1707 = vadd.f32 %v1706, 1.1283791
    %v1708 = vmul.f32 %v1694, %v1707
    %v1709 = vmul.f32 %v1697, 3.8918573e-05
    %v1710 = vadd.f32 %v1709, 0.001143296
    %v1711 = vmul.f32 %v1697, %v1710
    %v1712 = vadd.f32 %v1711, 0.014752088
    %v1713 = vmul.f32 %v1697, %v1712
    %v1714 = vadd.f32 %v1713, 0.112945676
    %v1715 = vmul.f32 %v1697, %v1714
    %v1716 = vadd.f32 %v1715, 0.4994258
    %v1717 = vmul.f32 %v1697, %v1716
    %v1718 = vadd.f32 %v1717, 1.0
    %v1719 = vrcp.pop %v1718
    %v1720 = vmul.f32 %v1718, %v1719
    %v1721 = vsub.f32 1.0, %v1720
    %v1722 = vmul.f32 %v1719, %v1721
    %v1723 = vadd.f32 %v1719, %v1722
    %vm1724 = vweird.f32 %v1718
    %vm1725 = vweird.f32 %v1719
    %vm1726 = vmor %vm1724, %vm1725
    %v1727 = vsel %vm1726, %v1719, %v1723
    %v1728 = vand.u32 2147483647, %v1718
    %vm1729 = vcmp.eq.f32.partialorder %v1728, 8.507059e+37
    %v1730 = vand.u32 %v1718, 2147483648
    %v1731 = vor.u32 1.1754944e-38, %v1730
    %v1732 = vsel %vm1729, %v1731, %v1727
    %v1733 = vmul.f32 %v1708, %v1732
    %v1734 = vmin.f32 %v1733, 1.0
    %v1735 = vmax.f32 %v1734, -1.0
    %v1736 = vmul.f32 %v1695, %v1695
    %v1737 = vmin.f32 16.0, %v1736
    %v1738 = vmul.f32 %v1737, 2.1237322e-06
    %v1739 = vadd.f32 %v1738, 0.00028619796
    %v1740 = vmul.f32 %v1737, %v1739
    %v1741 = vadd.f32 %v1740, 0.0036580483
    %v1742 = vmul.f32 %v1737, %v1741
    %v1743 = vadd.f32 %v1742, 0.05243302
    %v1744 = vmul.f32 %v1737, %v1743
    %v1745 = vadd.f32 %v1744, 0.18741608
    %v1746 = vmul.f32 %v1737, %v1745
    %v1747 = vadd.f32 %v1746, 1.1283791
    %v1748 = vmul.f32 %v1695, %v1747
    %v1749 = vmul.f32 %v1737, 3.8918573e-05
    %v1750 = vadd.f32 %v1749, 0.001143296
    %v1751 = vmul.f32 %v1737, %v1750
    %v1752 = vadd.f32 %v1751, 0.014752088
    %v1753 = vmul.f32 %v1737, %v1752
    %v1754 = vadd.f32 %v1753, 0.112945676
    %v1755 = vmul.f32 %v1737, %v1754
    %v1756 = vadd.f32 %v1755, 0.4994258
    %v1757 = vmul.f32 %v1737, %v1756
    %v1758 = vadd.f32 %v1757, 1.0
    %v1759 = vrcp.pop %v1758
    %v1760 = vmul.f32 %v1758, %v1759
    %v1761 = vsub.f32 1.0, %v1760
    %v1762 = vmul.f32 %v1759, %v1761
    %v1763 = vadd.f32 %v1759, %v1762
    %vm1764 = vweird.f32 %v1758
    %vm1765 = vweird.f32 %v1759
    %vm1766 = vmor %vm1764, %vm1765
    %v1767 = vsel %vm1766, %v1759, %v1763
    %v1768 = vand.u32 2147483647, %v1758
    %vm1769 = vcmp.eq.f32.partialorder %v1768, 8.507059e+37
    %v1770 = vand.u32 %v1758, 2147483648
    %v1771 = vor.u32 1.1754944e-38, %v1770
    %v1772 = vsel %vm1769, %v1771, %v1767
    %v1773 = vmul.f32 %v1748, %v1772
    %v1774 = vmin.f32 %v1773, 1.0
    %v1775 = vmax.f32 %v1774, -1.0
    %v1776 = vadd.f32 %v1735, 1.0
    %v1777 = vadd.f32 %v1775, 1.0
    %v1778 = vmul.f32 %v1692, %v1776
    %v1779 = vmul.f32 %v1693, %v1777
    %v1780 = vld [vmem:[%s0 + $0x400] sm:$0xff]
    %v1781 = vld [vmem:[%s0 + $0x408] sm:$0xff]
    %v1782 = vld [vmem:[%s0 + $0x410] sm:$0xff]
    %v1783 = vld [vmem:[%s0 + $0x418] sm:$0xff]
    %v1784 = vld [vmem:[%s0 + $0x420] sm:$0xff]
    %v1785 = vld [vmem:[%s0 + $0x428] sm:$0xff]
    %v1786 = vld [vmem:[%s0 + $0x430] sm:$0xff]
    %v1787 = vld [vmem:[%s0 + $0x438] sm:$0xff]
    %v1788 = vld [vmem:[%s0 + $0x440] sm:$0x1]
    %v1789 = vperm.slane %v1788, 0
    %v1791 = vsel %vm74, %v1778, 0
    %v1794 = vsel %vm74, %v1779, 0
    %1796 = vmatpush.msra.mxu0 0.0
    %1797 = vmatpush.msra.mxu0 0.0
    %1798 = vmatpush.msra.mxu0 0.0
    %1799 = vmatpush.msra.mxu0 0.0
    %1800 = vmatpush.msra.mxu0 0.0
    %1801 = vmatpush.msra.mxu0 0.0
    %1802 = vmatpush.msra.mxu0 0.0
    %1803 = vmatpush.msra.mxu0 0.0
    %1804 = vmatpush.msra.mxu0 %v1787
    %1805 = vmatpush.msra.mxu0 %v1786
    %1806 = vmatpush.msra.mxu0 %v1785
    %1807 = vmatpush.msra.mxu0 %v1784
    %1808 = vmatpush.msra.mxu0 %v1783
    %1809 = vmatpush.msra.mxu0 %v1782
    %1810 = vmatpush.msra.mxu0 %v1781
    %1811 = vmatpush.msra.mxu0 %v1780
    %1812 = vmatmul.f32.gmra.mxu0 %v1791
    %v1813 = vpop.f32.mrf.mxu0
    %v1814 = vadd.f32 %v1789, %v1813
    %1815 = vmatmul.f32.gmra.mxu0 %v1794
    %v1816 = vpop.f32.mrf.mxu0
    %v1817 = vadd.f32 %v1789, %v1816
    %1818 = vdwg.mxu0
    %v1819 = vadd.f32 %v1814, %v1655
    %v1820 = vadd.f32 %v1817, %v1656
    %v1821 = vld [vmem:[%s0 + $0x448] sm:$0x1]
    %v1822 = vld [vmem:[%s0 + $0x450] sm:$0x1]
    %v1823 = vsel %vm141, %v1819, 0.0
    %1824 = vadd.xlane.f32.xlu0 %v1823
    %v1825 = vpop.xlane.xlu0 %1824
    %v1826 = vsel %vm141, %v1820, 0.0
    %1827 = vadd.xlane.f32.xlu0 %v1826
    %v1828 = vpop.xlane.xlu0 %1827
    %v1829 = vmul.f32 %v1825, %v196
    %v1830 = vmul.f32 %v1828, %v196
    %v1831 = vsub.f32 %v1819, %v1829
    %v1832 = vsub.f32 %v1820, %v1830
    %v1833 = vmul.f32 %v1831, %v1831
    %v1834 = vmul.f32 %v1832, %v1832
    %v1835 = vsel %vm141, %v1833, 0.0
    %1836 = vadd.xlane.f32.xlu0 %v1835
    %v1837 = vpop.xlane.xlu0 %1836
    %v1838 = vsel %vm141, %v1834, 0.0
    %1839 = vadd.xlane.f32.xlu0 %v1838
    %v1840 = vpop.xlane.xlu0 %1839
    %v1841 = vmul.f32 %v1837, %v196
    %v1842 = vmul.f32 %v1840, %v196
    %v1843 = vadd.f32 %v1841, 1e-12
    %v1844 = vadd.f32 %v1842, 1e-12
    %v1845 = vrsqrt.pop %v1843
    %v1846 = vmul.f32 %v1845, %v1843
    %v1847 = vmul.f32 %v1846, %v1845
    %v1848 = vmul.f32 0.5, %v1847
    %v1849 = vsub.f32 1.5, %v1848
    %v1850 = vmul.f32 %v1845, %v1849
    %vm1851 = vweird.f32 %v1843
    %vm1852 = vweird.f32 %v1845
    %vm1853 = vmor %vm1851, %vm1852
    %v1854 = vsel %vm1853, %v1845, %v1850
    %v1855 = vrsqrt.pop %v1844
    %v1856 = vmul.f32 %v1855, %v1844
    %v1857 = vmul.f32 %v1856, %v1855
    %v1858 = vmul.f32 0.5, %v1857
    %v1859 = vsub.f32 1.5, %v1858
    %v1860 = vmul.f32 %v1855, %v1859
    %vm1861 = vweird.f32 %v1844
    %vm1862 = vweird.f32 %v1855
    %vm1863 = vmor %vm1861, %vm1862
    %v1864 = vsel %vm1863, %v1855, %v1860
    %v1865 = vmul.f32 %v1831, %v1854
    %v1866 = vmul.f32 %v1832, %v1864
    %v1867 = vperm.slane %v1821, 0
    %v1868 = vmul.f32 %v1865, %v1867
    %v1869 = vmul.f32 %v1866, %v1867
    %v1870 = vperm.slane %v1822, 0
    %v1871 = vadd.f32 %v1868, %v1870
    %v1872 = vadd.f32 %v1869, %v1870
    %v1873 = vld [vmem:[%s0 + $0xb0] sm:$0xff]
    %v1874 = vld [vmem:[%s0 + $0xb8] sm:$0xff]
    %v1875 = vld [vmem:[%s0 + $0xc0] sm:$0xff]
    %v1876 = vld [vmem:[%s0 + $0xc8] sm:$0xff]
    %v1877 = vld [vmem:[%s0 + $0xd0] sm:$0x1]
    %v1878 = vperm.slane %v1877, 0
    %v1880 = vsel %vm141, %v1871, 0
    %v1883 = vsel %vm141, %v1872, 0
    %1885 = vmatpush.msra.mxu0 0.0
    %1886 = vmatpush.msra.mxu0 0.0
    %1887 = vmatpush.msra.mxu0 0.0
    %1888 = vmatpush.msra.mxu0 0.0
    %1889 = vmatpush.msra.mxu0 0.0
    %1890 = vmatpush.msra.mxu0 0.0
    %1891 = vmatpush.msra.mxu0 0.0
    %1892 = vmatpush.msra.mxu0 0.0
    %1893 = vmatpush.msra.mxu0 0.0
    %1894 = vmatpush.msra.mxu0 0.0
    %1895 = vmatpush.msra.mxu0 0.0
    %1896 = vmatpush.msra.mxu0 0.0
    %1897 = vmatpush.msra.mxu0 %v1876
    %1898 = vmatpush.msra.mxu0 %v1875
    %1899 = vmatpush.msra.mxu0 %v1874
    %1900 = vmatpush.msra.mxu0 %v1873
    %1901 = vmatmul.f32.gmra.mxu0 %v1880
    %v1902 = vpop.f32.mrf.mxu0
    %v1903 = vadd.f32 %v1878, %v1902
    %1904 = vmatmul.f32.gmra.mxu0 %v1883
    %v1905 = vpop.f32.mrf.mxu0
    %v1906 = vadd.f32 %v1878, %v1905
    %1907 = vdwg.mxu0
    %v1908 = vtanh.pop %v1903
    %v1909 = vtanh.pop %v1906
    %v1910 = vld [vmem:[%s0 + $0xd8] sm:$0xff]
    %v1911 = vld [vmem:[%s0 + $0xe0] sm:$0xff]
    %v1912 = vld [vmem:[%s0 + $0xe8] sm:$0xff]
    %v1913 = vld [vmem:[%s0 + $0xf0] sm:$0xff]
    %v1914 = vld [vmem:[%s0 + $0xf8] sm:$0x1]
    %v1915 = vperm.slane %v1914, 0
    %v1917 = vsel %vm141, %v1908, 0
    %v1920 = vsel %vm141, %v1909, 0
    %1922 = vmatpush.msra.mxu0 0.0
    %1923 = vmatpush.msra.mxu0 0.0
    %1924 = vmatpush.msra.mxu0 0.0
    %1925 = vmatpush.msra.mxu0 0.0
    %1926 = vmatpush.msra.mxu0 0.0
    %1927 = vmatpush.msra.mxu0 0.0
    %1928 = vmatpush.msra.mxu0 0.0
    %1929 = vmatpush.msra.mxu0 0.0
    %1930 = vmatpush.msra.mxu0 0.0
    %1931 = vmatpush.msra.mxu0 0.0
    %1932 = vmatpush.msra.mxu0 0.0
    %1933 = vmatpush.msra.mxu0 0.0
    %1934 = vmatpush.msra.mxu0 %v1913
    %1935 = vmatpush.msra.mxu0 %v1912
    %1936 = vmatpush.msra.mxu0 %v1911
    %1937 = vmatpush.msra.mxu0 %v1910
    %1938 = vmatmul.f32.gmra.mxu0 %v1917
    %v1939 = vpop.f32.mrf.mxu0
    %v1940 = vadd.f32 %v1915, %v1939
    %1941 = vmatmul.f32.gmra.mxu0 %v1920
    %v1942 = vpop.f32.mrf.mxu0
    %v1943 = vadd.f32 %v1915, %v1942
    %1944 = vdwg.mxu0
    %1945 = vst.msk [vmem:[#allocation2] sm:$0xff] %vm20, %v1940
    %1946 = vst.msk [vmem:[#allocation2 + $0x8] sm:$0xff] %vm20, %v1943
    // Predicated region
    $region14: #{forward.1} parent=1 // pred_check
      _
    $region15: #{forward.1} parent=1 // pred_check_branch
      %1948 = sbr.rel (0) target = $region17
    $region16: #{forward.1} parent=1 // pred_region
      %1950 = vsyncadd [#allocation3], 0
      %s1951 = sshll.u32 [#allocation2], 4
      %s1952 = int_to_ptr.vmem [resolvable:$true] %s1951
      %s1953 = sshll.u32 %s3, 4
      %s1954 = int_to_ptr.hbm [resolvable:$true] %s1953
      %1959 = dma.vmem_to_hbm [thread:$0]  %s1952, 256, %s1954, [#allocation3], 128, 128, 8
    $region17: #{forward.1} parent=1 // pred_fallthru
      _
    // Predicated region
    $region18: #{forward.1} parent=1 // pred_check
      _
    $region19: #{forward.1} parent=1 // pred_check_branch
      %1961 = sbr.rel (0) target = $region21
    $region20: #{forward.1} parent=1 // pred_region
      %1963 = dma.done [#allocation3], 256
    $region21: #{forward.1} parent=1 // pred_fallthru
      _
    %1964 = vsyncpa [#allocation3], 1

</llo_original>
